<compile_context>
chip_gen: v5e
topology: v5e:2x2
jax: 0.10.0
libtpu: 0.0.40
codegen_flags: <defaults>
</compile_context>

<pallas_src>
import jax
import jax.numpy as jnp
import numpy as np
from jax.experimental import pallas as pl
from jax.experimental.pallas import tpu as pltpu


def _round_up(x, m):
    return ((x + m - 1) // m) * m


def _softplus(x):
    # numerically-stable softplus matching torch.nn.functional.softplus defaults
    return jnp.where(x > 20.0, x, jnp.log(1.0 + jnp.exp(jnp.minimum(x, 20.0))))


def hawkes_kernel(t_ref, tpad_ref, alin_ref, blin_ref, base_ref, out_ref):
    # Layout: history length L on lanes, batch rows on sublanes.
    #   t_ref    (tb, 1)   event time per row
    #   tpad_ref (tb, L)   padded history times
    #   alin_ref (tb, L)   pre-contracted alpha linear (x @ Wa + ba)
    #   blin_ref (tb, L)   pre-contracted beta  linear (x @ Wb + bb)
    #   base_ref (tb, 1)   Poisson base rate per row
    #   out_ref  (tb, 1)
    t = t_ref[...]                        # (tb, 1)
    t_pad = tpad_ref[...]                 # (tb, L)

    alphas = _softplus(alin_ref[...])     # (tb, L)  EUP exp+log
    betas = _softplus(blin_ref[...])      # (tb, L)

    mask = t_pad < t                      # (tb, L)
    # Clamp so masked-out (future) entries never feed exp() a huge positive arg.
    delta_t = jnp.maximum(t - t_pad, 0.0)

    terms = jnp.where(mask, alphas * jnp.exp(-betas * delta_t), 0.0)
    incr = jnp.sum(terms, axis=-1, keepdims=True)          # (tb, 1)

    out_ref[...] = base_ref[...] + incr


def hawkes_forward(src, dst, t, x_pad, t_pad, params, *, tb=256):
    """x_pad: (B, L, F) event features. Returns intensity (B,)."""
    node_emb = params["node_emb"]          # (n_nodes, C)
    alpha_p = params["alpha"]              # (F+1,)  [w_0..w_{F-1}, bias]
    beta_p = params["beta"]                # (F+1,)

    B, L, F_ = x_pad.shape

    # ---- tiny contractions stay in plain XLA (wrong shape for MXU; avoids the
    #      (B,L,F)->(F,B,L) transpose materialization entirely). Kernel inputs
    #      become dense lane-major (B, L) planes.
    aw, ab = alpha_p[:F_], alpha_p[F_]
    bw, bb = beta_p[:F_], beta_p[F_]
    alpha_lin = jnp.einsum("blf,f->bl", x_pad, aw) + ab      # (B, L)
    beta_lin = jnp.einsum("blf,f->bl", x_pad, bw) + bb       # (B, L)

    # TODO(synk): exact Poisson module definition unavailable; using low-rank
    #             embedding dot-product + softplus as the base rate (in XLA).
    base = jax.nn.softplus(
        jnp.sum(node_emb[src] * node_emb[dst], axis=-1))     # (B,)

    # ---- batch tiling: tb rows per grid step (multiple of 8 sublanes).
    tb = min(tb, _round_up(B, 8))
    tb = _round_up(tb, 8)
    Bp = _round_up(B, tb)
    pad = Bp - B

    def _pad_rows(a):
        if pad == 0:
            return a
        return jnp.pad(a, ((0, pad),) + ((0, 0),) * (a.ndim - 1))

    t2 = _pad_rows(t.reshape(B, 1).astype(jnp.float32))
    tp = _pad_rows(t_pad.astype(jnp.float32))
    al = _pad_rows(alpha_lin.astype(jnp.float32))
    bl = _pad_rows(beta_lin.astype(jnp.float32))
    bs = _pad_rows(base.reshape(B, 1).astype(jnp.float32))
    # Padded rows: t=0, t_pad=0 -> mask all False -> incr 0; sliced off below.

    row_spec = pl.BlockSpec((tb, L), lambda i: (i, 0))
    col_spec = pl.BlockSpec((tb, 1), lambda i: (i, 0))

    cost = pl.CostEstimate(
        flops=10 * Bp * L,                 # compares / muls / selects / reduce
        transcendentals=5 * Bp * L,        # 2x softplus (exp+log) + decay exp
        bytes_accessed=4 * (3 * Bp * L + 3 * Bp),
    )

    out = pl.pallas_call(
        hawkes_kernel,
        out_shape=jax.ShapeDtypeStruct((Bp, 1), jnp.float32),
        grid_spec=pltpu.PrefetchScalarGridSpec(
            num_scalar_prefetch=0,
            grid=(Bp // tb,),
            in_specs=[col_spec, row_spec, row_spec, row_spec, col_spec],
            out_specs=col_spec,
        ),
        compiler_params=pltpu.CompilerParams(
            dimension_semantics=("parallel",)),
        cost_estimate=cost,
    )(t2, tp, al, bl, bs)
    return out[:B, 0]


def hawkes_ref(src, dst, t, x_pad, t_pad, params):
    """Pure-JAX reference mirroring the PyTorch forward (order=None)."""
    node_emb, ap, bp = params["node_emb"], params["alpha"], params["beta"]
    F_ = x_pad.shape[-1]
    aw, ab = ap[:F_], ap[F_]
    bw, bb = bp[:F_], bp[F_]
    alphas = jax.nn.softplus(jnp.einsum("blf,f->bl", x_pad, aw) + ab)
    betas = jax.nn.softplus(jnp.einsum("blf,f->bl", x_pad, bw) + bb)
    delta_t = t[:, None] - t_pad
    mask = t_pad < t[:, None]
    terms = jnp.where(mask, alphas * jnp.exp(-betas * jnp.maximum(delta_t, 0.0)), 0.0)
    incr = terms.sum(axis=1)
    base = jax.nn.softplus(jnp.sum(node_emb[src] * node_emb[dst], axis=-1))
    return base + incr


if __name__ == "__main__":
    key = jax.random.PRNGKey(0)
    n_nodes, n_components, n_features = 10, 8, 3
    B, L = 1024, 128   # batch of events, padded history length (grid of 4 tiles)

    k = jax.random.split(key, 8)
    # Deterministic "parameters"
    node_emb = 0.3 * jax.random.normal(k[0], (n_nodes, n_components), jnp.float32)
    alpha_p = 0.5 * jax.random.normal(k[1], (n_features + 1,), jnp.float32)
    beta_p = 0.5 * jax.random.normal(k[2], (n_features + 1,), jnp.float32)
    params = {"node_emb": node_emb, "alpha": alpha_p, "beta": beta_p}

    # Deterministic inputs
    src = jax.random.randint(k[3], (B,), 0, n_nodes)
    dst = jax.random.randint(k[4], (B,), 0, n_nodes)
    t = jnp.sort(jax.random.uniform(k[5], (B,), jnp.float32, 1.0, 2.0))
    t_pad = jax.random.uniform(k[6], (B, L), jnp.float32, 0.0, 2.5)
    x_pad = jax.random.normal(k[7], (B, L, n_features), jnp.float32)

    fwd = jax.jit(lambda s, d, tt, xp, tp:
                  hawkes_forward(s, d, tt, xp, tp, params, tb=256))
    hr = jax.block_until_ready(fwd(src, dst, t, x_pad, t_pad))
    hr_ref = hawkes_ref(src, dst, t, x_pad, t_pad, params)

    np.testing.assert_allclose(np.asarray(hr), np.asarray(hr_ref),
                               rtol=1e-4, atol=1e-4)
    assert not np.isnan(np.asarray(hr)).any()
    print("KERNEL_OK")
</pallas_src>

<mosaic_0001>
module attributes {stable_mosaic.version = 11 : i64} {
  func.func @hawkes_kernel(%arg0: i32, %arg1: memref<256x1xf32, #tpu.memory_space<vmem>>, %arg2: memref<256x128xf32, #tpu.memory_space<vmem>>, %arg3: memref<256x128xf32, #tpu.memory_space<vmem>>, %arg4: memref<256x128xf32, #tpu.memory_space<vmem>>, %arg5: memref<256x1xf32, #tpu.memory_space<vmem>>, %arg6: memref<256x1xf32, #tpu.memory_space<vmem>>) attributes {dimension_semantics = [#tpu.dimension_semantics<parallel>], iteration_bounds = array<i64: 4>, scalar_prefetch = 0 : i64, scratch_operands = 0 : i64, tpu.core_type = #tpu.core_type<tc>, window_params = [{transform_indices = @transform_0, window_bounds = array<i64: 256, 1>}, {transform_indices = @transform_1, window_bounds = array<i64: 256, 128>}, {transform_indices = @transform_2, window_bounds = array<i64: 256, 128>}, {transform_indices = @transform_3, window_bounds = array<i64: 256, 128>}, {transform_indices = @transform_4, window_bounds = array<i64: 256, 1>}, {transform_indices = @transform_5, window_bounds = array<i64: 256, 1>}]} {
    %c0 = arith.constant 0 : index
    %c0_0 = arith.constant 0 : index
    %0 = vector.load %arg1[%c0, %c0_0] : memref<256x1xf32, #tpu.memory_space<vmem>>, vector<256x1xf32>
    %c0_1 = arith.constant 0 : index
    %c0_2 = arith.constant 0 : index
    %1 = vector.load %arg2[%c0_1, %c0_2] : memref<256x128xf32, #tpu.memory_space<vmem>>, vector<256x128xf32>
    %c0_3 = arith.constant 0 : index
    %c0_4 = arith.constant 0 : index
    %2 = vector.load %arg3[%c0_3, %c0_4] : memref<256x128xf32, #tpu.memory_space<vmem>>, vector<256x128xf32>
    %cst = arith.constant 2.000000e+01 : f32
    %3 = vector.broadcast %cst : f32 to vector<256x128xf32>
    %4 = arith.cmpf ogt, %2, %3 : vector<256x128xf32>
    %cst_5 = arith.constant 2.000000e+01 : f32
    %5 = vector.broadcast %cst_5 : f32 to vector<256x128xf32>
    %6 = arith.minimumf %2, %5 : vector<256x128xf32>
    %7 = math.exp %6 : vector<256x128xf32>
    %cst_6 = arith.constant 1.000000e+00 : f32
    %8 = vector.broadcast %cst_6 : f32 to vector<256x128xf32>
    %9 = arith.addf %8, %7 : vector<256x128xf32>
    %10 = math.log %9 : vector<256x128xf32>
    %11 = arith.select %4, %2, %10 : vector<256x128xi1>, vector<256x128xf32>
    %c0_7 = arith.constant 0 : index
    %c0_8 = arith.constant 0 : index
    %12 = vector.load %arg4[%c0_7, %c0_8] : memref<256x128xf32, #tpu.memory_space<vmem>>, vector<256x128xf32>
    %cst_9 = arith.constant 2.000000e+01 : f32
    %13 = vector.broadcast %cst_9 : f32 to vector<256x128xf32>
    %14 = arith.cmpf ogt, %12, %13 : vector<256x128xf32>
    %cst_10 = arith.constant 2.000000e+01 : f32
    %15 = vector.broadcast %cst_10 : f32 to vector<256x128xf32>
    %16 = arith.minimumf %12, %15 : vector<256x128xf32>
    %17 = math.exp %16 : vector<256x128xf32>
    %cst_11 = arith.constant 1.000000e+00 : f32
    %18 = vector.broadcast %cst_11 : f32 to vector<256x128xf32>
    %19 = arith.addf %18, %17 : vector<256x128xf32>
    %20 = math.log %19 : vector<256x128xf32>
    %21 = arith.select %14, %12, %20 : vector<256x128xi1>, vector<256x128xf32>
    %22 = vector.broadcast %0 : vector<256x1xf32> to vector<256x128xf32>
    %23 = arith.cmpf olt, %1, %22 : vector<256x128xf32>
    %24 = vector.broadcast %0 : vector<256x1xf32> to vector<256x128xf32>
    %25 = arith.subf %24, %1 : vector<256x128xf32>
    %cst_12 = arith.constant 0.000000e+00 : f32
    %26 = vector.broadcast %cst_12 : f32 to vector<256x128xf32>
    %27 = arith.maximumf %25, %26 : vector<256x128xf32>
    %cst_13 = arith.constant 0.000000e+00 : f32
    %28 = vector.broadcast %cst_13 : f32 to vector<256x128xf32>
    %29 = arith.subf %28, %21 : vector<256x128xf32>
    %30 = arith.mulf %29, %27 : vector<256x128xf32>
    %31 = math.exp %30 : vector<256x128xf32>
    %32 = arith.mulf %11, %31 : vector<256x128xf32>
    %cst_14 = arith.constant 0.000000e+00 : f32
    %33 = vector.broadcast %cst_14 : f32 to vector<256x128xf32>
    %34 = arith.select %23, %32, %33 : vector<256x128xi1>, vector<256x128xf32>
    %cst_15 = arith.constant dense<0.000000e+00> : vector<256xf32>
    %35 = vector.multi_reduction <add>, %34, %cst_15 [1] : vector<256x128xf32> to vector<256xf32>
    %36 = vector.shape_cast %35 : vector<256xf32> to vector<256x1xf32>
    %c0_16 = arith.constant 0 : index
    %c0_17 = arith.constant 0 : index
    %37 = vector.load %arg5[%c0_16, %c0_17] : memref<256x1xf32, #tpu.memory_space<vmem>>, vector<256x1xf32>
    %38 = arith.addf %37, %36 : vector<256x1xf32>
    %c0_18 = arith.constant 0 : index
    %c0_19 = arith.constant 0 : index
    %39 = vector.load %arg6[%c0_18, %c0_19] : memref<256x1xf32, #tpu.memory_space<vmem>>, vector<256x1xf32>
    tpu.vector_store %arg6[%c0_18, %c0_19], %38 {strides = array<i32>} : memref<256x1xf32, #tpu.memory_space<vmem>>, vector<256x1xf32>,
    return
  }
  func.func @transform_0(%arg0: i32) -> (i32, i32) {
    %c0_i32 = arith.constant 0 : i32
    %c0_i32_0 = arith.constant 0 : i32
    return %arg0, %c0_i32 : i32, i32
  }
  func.func @transform_1(%arg0: i32) -> (i32, i32) {
    %c0_i32 = arith.constant 0 : i32
    %c0_i32_0 = arith.constant 0 : i32
    return %arg0, %c0_i32 : i32, i32
  }
  func.func @transform_2(%arg0: i32) -> (i32, i32) {
    %c0_i32 = arith.constant 0 : i32
    %c0_i32_0 = arith.constant 0 : i32
    return %arg0, %c0_i32 : i32, i32
  }
  func.func @transform_3(%arg0: i32) -> (i32, i32) {
    %c0_i32 = arith.constant 0 : i32
    %c0_i32_0 = arith.constant 0 : i32
    return %arg0, %c0_i32 : i32, i32
  }
  func.func @transform_4(%arg0: i32) -> (i32, i32) {
    %c0_i32 = arith.constant 0 : i32
    %c0_i32_0 = arith.constant 0 : i32
    return %arg0, %c0_i32 : i32, i32
  }
  func.func @transform_5(%arg0: i32) -> (i32, i32) {
    %c0_i32 = arith.constant 0 : i32
    %c0_i32_0 = arith.constant 0 : i32
    return %arg0, %c0_i32 : i32, i32
  }
}

</mosaic_0001>

<llo_original>
// kernel: _lambda_.1
$region0: #{_lambda_.1}
  #allocation0 [shape = 'u32[]', space=smem, size = 0x4, offset = 0x4, fixed_abs, tag = 'smem constant byte address 0x4 - core index']
  #allocation1 [shape = 'u32[72,128]{1,0:T(1,128)}', space=vmem, size = 0x9000, scoped, tag = 'internal scratch']
  %s0 = inlined_call_operand.vmem [shape: f32[1024,1], index: 0, kind: input, shape index: {}]
  %s1 = inlined_call_operand.vmem [shape: f32[1024,128], index: 1, kind: input, shape index: {}]
  %s2 = inlined_call_operand.vmem [shape: f32[1024,128], index: 2, kind: input, shape index: {}]
  %s3 = inlined_call_operand.vmem [shape: f32[1024,128], index: 3, kind: input, shape index: {}]
  %s4 = inlined_call_operand.vmem [shape: f32[1024,1], index: 4, kind: input, shape index: {}]
  %s5 = inlined_call_operand.vmem [shape: f32[1024,1], index: 5, kind: output, shape index: {}]
  %s6 = sld [smem:[#allocation0]]
  $region53: #{_lambda_.1} parent=0
    _
  %s8 = ssub.s32 1, %s6
  %s9 = scalar_select 0, %s8, %s6
  loop: start=0, step=1, limit=6
  $region2: #{_lambda_.1} parent=0 // loop_pre_header
    _
  $region3: #{_lambda_.1} parent=0 // loop_header
    %s11 = sphi 0, %s15
    %p12 = scmp.ge.s32.totalorder %s11, 6
    %s21 = sphi 0, %s23
    %s24 = sphi 0, %s21
    %s25 = sphi 0, %s24
    %s41 = sphi 0, %s25
    %s47 = sphi 0, %s49
    %s50 = sphi 0, %s47
    %s51 = sphi 0, %s50
    %s67 = sphi 0, %s51
    %s73 = sphi 0, %s75
    %s76 = sphi 0, %s73
    %s77 = sphi 0, %s76
    %s93 = sphi 0, %s77
    %s99 = sphi 0, %s101
    %s102 = sphi 0, %s99
    %s103 = sphi 0, %s102
    %s119 = sphi 0, %s103
    %s125 = sphi 0, %s127
    %s128 = sphi 0, %s125
    %s129 = sphi 0, %s128
    %s145 = sphi 0, %s129
    %s151 = sphi 0, %s153
    %s154 = sphi 0, %s151
    %s155 = sphi 0, %s154
    %s171 = sphi 0, %s155
  $region4: #{_lambda_.1} parent=0 // loop_header_branch
    %14 = sbr.rel (%p12) target = $region8
  $region5: #{_lambda_.1} parent=0 // loop_body
    %s16 = ssub.s32 %s11, 1
    %s17 = ssub.s32 %s11, 2
    %s18 = sadd.s32 %s11, 1
    %s19 = ssub.s32 %s11, %s18
    %p20 = scmp.eq.s32.totalorder %s19, 0
    %s22 = sadd.s32 %s21, 1
    %s23 = scalar_select %p20, %s21, %s22
    %p26 = pneg %p20
    %p27 = scmp.eq.s32.totalorder %s11, 3
    %p28 = por %p26, %p27
    %p29 = scmp.ne.s32.totalorder %s21, %s24
    %p30 = scmp.eq.s32.totalorder %s11, 0
    %p31 = por %p29, %p30
    %p32 = scmp.ne.s32.totalorder %s21, %s24
    %p33 = scmp.eq.s32.totalorder %s16, 3
    %p34 = por %p32, %p33
    %p35 = scmp.ne.s32.totalorder %s24, %s25
    %p36 = scmp.eq.s32.totalorder %s16, 0
    %p37 = por %p35, %p36
    %p38 = scmp.ne.s32.totalorder %s24, %s25
    %p39 = scmp.eq.s32.totalorder %s17, 3
    %p40 = por %p38, %p39
    %p42 = scmp.ne.s32.totalorder %s25, %s41
    %p43 = scmp.eq.s32.totalorder %s17, 0
    %p44 = por %p42, %p43
    %s45 = ssub.s32 %s11, %s18
    %p46 = scmp.eq.s32.totalorder %s45, 0
    %s48 = sadd.s32 %s47, 1
    %s49 = scalar_select %p46, %s47, %s48
    %p52 = pneg %p46
    %p53 = scmp.eq.s32.totalorder %s11, 3
    %p54 = por %p52, %p53
    %p55 = scmp.ne.s32.totalorder %s47, %s50
    %p56 = scmp.eq.s32.totalorder %s11, 0
    %p57 = por %p55, %p56
    %p58 = scmp.ne.s32.totalorder %s47, %s50
    %p59 = scmp.eq.s32.totalorder %s16, 3
    %p60 = por %p58, %p59
    %p61 = scmp.ne.s32.totalorder %s50, %s51
    %p62 = scmp.eq.s32.totalorder %s16, 0
    %p63 = por %p61, %p62
    %p64 = scmp.ne.s32.totalorder %s50, %s51
    %p65 = scmp.eq.s32.totalorder %s17, 3
    %p66 = por %p64, %p65
    %p68 = scmp.ne.s32.totalorder %s51, %s67
    %p69 = scmp.eq.s32.totalorder %s17, 0
    %p70 = por %p68, %p69
    %s71 = ssub.s32 %s11, %s18
    %p72 = scmp.eq.s32.totalorder %s71, 0
    %s74 = sadd.s32 %s73, 1
    %s75 = scalar_select %p72, %s73, %s74
    %p78 = pneg %p72
    %p79 = scmp.eq.s32.totalorder %s11, 3
    %p80 = por %p78, %p79
    %p81 = scmp.ne.s32.totalorder %s73, %s76
    %p82 = scmp.eq.s32.totalorder %s11, 0
    %p83 = por %p81, %p82
    %p84 = scmp.ne.s32.totalorder %s73, %s76
    %p85 = scmp.eq.s32.totalorder %s16, 3
    %p86 = por %p84, %p85
    %p87 = scmp.ne.s32.totalorder %s76, %s77
    %p88 = scmp.eq.s32.totalorder %s16, 0
    %p89 = por %p87, %p88
    %p90 = scmp.ne.s32.totalorder %s76, %s77
    %p91 = scmp.eq.s32.totalorder %s17, 3
    %p92 = por %p90, %p91
    %p94 = scmp.ne.s32.totalorder %s77, %s93
    %p95 = scmp.eq.s32.totalorder %s17, 0
    %p96 = por %p94, %p95
    %s97 = ssub.s32 %s11, %s18
    %p98 = scmp.eq.s32.totalorder %s97, 0
    %s100 = sadd.s32 %s99, 1
    %s101 = scalar_select %p98, %s99, %s100
    %p104 = pneg %p98
    %p105 = scmp.eq.s32.totalorder %s11, 3
    %p106 = por %p104, %p105
    %p107 = scmp.ne.s32.totalorder %s99, %s102
    %p108 = scmp.eq.s32.totalorder %s11, 0
    %p109 = por %p107, %p108
    %p110 = scmp.ne.s32.totalorder %s99, %s102
    %p111 = scmp.eq.s32.totalorder %s16, 3
    %p112 = por %p110, %p111
    %p113 = scmp.ne.s32.totalorder %s102, %s103
    %p114 = scmp.eq.s32.totalorder %s16, 0
    %p115 = por %p113, %p114
    %p116 = scmp.ne.s32.totalorder %s102, %s103
    %p117 = scmp.eq.s32.totalorder %s17, 3
    %p118 = por %p116, %p117
    %p120 = scmp.ne.s32.totalorder %s103, %s119
    %p121 = scmp.eq.s32.totalorder %s17, 0
    %p122 = por %p120, %p121
    %s123 = ssub.s32 %s11, %s18
    %p124 = scmp.eq.s32.totalorder %s123, 0
    %s126 = sadd.s32 %s125, 1
    %s127 = scalar_select %p124, %s125, %s126
    %p130 = pneg %p124
    %p131 = scmp.eq.s32.totalorder %s11, 3
    %p132 = por %p130, %p131
    %p133 = scmp.ne.s32.totalorder %s125, %s128
    %p134 = scmp.eq.s32.totalorder %s11, 0
    %p135 = por %p133, %p134
    %p136 = scmp.ne.s32.totalorder %s125, %s128
    %p137 = scmp.eq.s32.totalorder %s16, 3
    %p138 = por %p136, %p137
    %p139 = scmp.ne.s32.totalorder %s128, %s129
    %p140 = scmp.eq.s32.totalorder %s16, 0
    %p141 = por %p139, %p140
    %p142 = scmp.ne.s32.totalorder %s128, %s129
    %p143 = scmp.eq.s32.totalorder %s17, 3
    %p144 = por %p142, %p143
    %p146 = scmp.ne.s32.totalorder %s129, %s145
    %p147 = scmp.eq.s32.totalorder %s17, 0
    %p148 = por %p146, %p147
    %s149 = ssub.s32 %s11, %s18
    %p150 = scmp.eq.s32.totalorder %s149, 0
    %s152 = sadd.s32 %s151, 1
    %s153 = scalar_select %p150, %s151, %s152
    %p156 = pneg %p150
    %p157 = scmp.eq.s32.totalorder %s11, 3
    %p158 = por %p156, %p157
    %p159 = scmp.ne.s32.totalorder %s151, %s154
    %p160 = scmp.eq.s32.totalorder %s11, 0
    %p161 = por %p159, %p160
    %p162 = scmp.ne.s32.totalorder %s151, %s154
    %p163 = scmp.eq.s32.totalorder %s16, 3
    %p164 = por %p162, %p163
    %p165 = scmp.ne.s32.totalorder %s154, %s155
    %p166 = scmp.eq.s32.totalorder %s16, 0
    %p167 = por %p165, %p166
    %p168 = scmp.ne.s32.totalorder %s154, %s155
    %p169 = scmp.eq.s32.totalorder %s17, 3
    %p170 = por %p168, %p169
    %p172 = scmp.ne.s32.totalorder %s155, %s171
    %p173 = scmp.eq.s32.totalorder %s17, 0
    %p174 = por %p172, %p173
    %p175 = scmp.le.s32.totalorder 1, %s11
    %p176 = scmp.lt.s32.totalorder %s11, 5
    %p177 = pnand %p175, %p176
    %p178 = pneg %p177
    // Predicated region
    $region9: #{_lambda_.1} parent=5 // pred_check
      _
    $region10: #{_lambda_.1} parent=5 // pred_check_branch
      %180 = sbr.rel (%p177) target = $region12
    $region11: #{_lambda_.1} parent=5 // pred_region
      %s181 = ssub.s32 %s11, 1
    $region12: #{_lambda_.1} parent=5 // pred_fallthru
      _
    %p182 = scmp.lt.s32.totalorder %s11, 4
    // Predicated region
    $region13: #{_lambda_.1} parent=5 // pred_check
      %p183 = pneg %p182
    $region14: #{_lambda_.1} parent=5 // pred_check_branch
      %185 = sbr.rel (%p183) target = $region16
    $region15: #{_lambda_.1} parent=5 // pred_region
      // Predicated region
      $region17: #{_lambda_.1} parent=15 // pred_check
        %p186 = pneg %p31
      $region18: #{_lambda_.1} parent=15 // pred_check_branch
        %188 = sbr.rel (%p186) target = $region20
      $region19: #{_lambda_.1} parent=15 // pred_region
        %s189 = smul.u32 32, %s11
        %p190 = scmp.lt.s32.totalorder %s189, 127
        %s191 = scalar_select %p190, %s189, 127
        %s192 = smul.addr %s191, 8
        %s193 = scalar_lea.vmem %s0, %s192
        %s194 = smul.u32 32, %s11
      $region20: #{_lambda_.1} parent=15 // pred_fallthru
        _
      // Predicated region
      $region21: #{_lambda_.1} parent=15 // pred_check
        %p195 = pneg %p57
      $region22: #{_lambda_.1} parent=15 // pred_check_branch
        %197 = sbr.rel (%p195) target = $region24
      $region23: #{_lambda_.1} parent=15 // pred_region
        %s198 = smul.u32 32, %s11
        %p199 = scmp.lt.s32.totalorder %s198, 127
        %s200 = scalar_select %p199, %s198, 127
        %s201 = smul.addr %s200, 8
        %s202 = scalar_lea.vmem %s1, %s201
        %s203 = smul.u32 32, %s11
      $region24: #{_lambda_.1} parent=15 // pred_fallthru
        _
      // Predicated region
      $region25: #{_lambda_.1} parent=15 // pred_check
        %p204 = pneg %p83
      $region26: #{_lambda_.1} parent=15 // pred_check_branch
        %206 = sbr.rel (%p204) target = $region28
      $region27: #{_lambda_.1} parent=15 // pred_region
        %s207 = smul.u32 32, %s11
        %p208 = scmp.lt.s32.totalorder %s207, 127
        %s209 = scalar_select %p208, %s207, 127
        %s210 = smul.addr %s209, 8
        %s211 = scalar_lea.vmem %s2, %s210
        %s212 = smul.u32 32, %s11
      $region28: #{_lambda_.1} parent=15 // pred_fallthru
        _
      // Predicated region
      $region29: #{_lambda_.1} parent=15 // pred_check
        %p213 = pneg %p109
      $region30: #{_lambda_.1} parent=15 // pred_check_branch
        %215 = sbr.rel (%p213) target = $region32
      $region31: #{_lambda_.1} parent=15 // pred_region
        %s216 = smul.u32 32, %s11
        %p217 = scmp.lt.s32.totalorder %s216, 127
        %s218 = scalar_select %p217, %s216, 127
        %s219 = smul.addr %s218, 8
        %s220 = scalar_lea.vmem %s3, %s219
        %s221 = smul.u32 32, %s11
      $region32: #{_lambda_.1} parent=15 // pred_fallthru
        _
      // Predicated region
      $region33: #{_lambda_.1} parent=15 // pred_check
        %p222 = pneg %p135
      $region34: #{_lambda_.1} parent=15 // pred_check_branch
        %224 = sbr.rel (%p222) target = $region36
      $region35: #{_lambda_.1} parent=15 // pred_region
        %s225 = smul.u32 32, %s11
        %p226 = scmp.lt.s32.totalorder %s225, 127
        %s227 = scalar_select %p226, %s225, 127
        %s228 = smul.addr %s227, 8
        %s229 = scalar_lea.vmem %s4, %s228
        %s230 = smul.u32 32, %s11
      $region36: #{_lambda_.1} parent=15 // pred_fallthru
        _
    $region16: #{_lambda_.1} parent=5 // pred_fallthru
      _
    %p231 = scmp.le.s32.totalorder 1, %s11
    %p232 = scmp.lt.s32.totalorder %s11, 5
    %p233 = pnand %p231, %p232
    %p234 = pneg %p233
    // Predicated region
    $region37: #{_lambda_.1} parent=5 // pred_check
      _
    $region38: #{_lambda_.1} parent=5 // pred_check_branch
      %236 = sbr.rel (%p233) target = $region40
    $region39: #{_lambda_.1} parent=5 // pred_region
      %s237 = ssub.s32 %s11, 1
      %s238 = smul.u32 32, %s16
      %p239 = scmp.lt.s32.totalorder %s238, 127
      %s240 = scalar_select %p239, %s238, 127
      %s241 = smul.addr %s240, 8
      %s242 = scalar_lea.vmem %s0, %s241
      %p243 = pneg %p37
      %p244 = pneg %p34
      %s245 = smul.u32 32, %s16
      %p246 = scmp.lt.s32.totalorder %s245, 127
      %s247 = scalar_select %p246, %s245, 127
      %s248 = smul.addr %s247, 8
      %s249 = scalar_lea.vmem %s1, %s248
      %p250 = pneg %p63
      %p251 = pneg %p60
      %s252 = smul.u32 32, %s16
      %p253 = scmp.lt.s32.totalorder %s252, 127
      %s254 = scalar_select %p253, %s252, 127
      %s255 = smul.addr %s254, 8
      %s256 = scalar_lea.vmem %s2, %s255
      %p257 = pneg %p89
      %p258 = pneg %p86
      %s259 = smul.u32 32, %s16
      %p260 = scmp.lt.s32.totalorder %s259, 127
      %s261 = scalar_select %p260, %s259, 127
      %s262 = smul.addr %s261, 8
      %s263 = scalar_lea.vmem %s3, %s262
      %p264 = pneg %p115
      %p265 = pneg %p112
      %s266 = smul.u32 32, %s16
      %p267 = scmp.lt.s32.totalorder %s266, 127
      %s268 = scalar_select %p267, %s266, 127
      %s269 = smul.addr %s268, 8
      %s270 = scalar_lea.vmem %s4, %s269
      %p271 = pneg %p141
      %p272 = pneg %p138
      %p273 = pneg %p167
      %p274 = pneg %p164
      %s275 = smul.u32 32, %s16
      %p276 = scmp.lt.s32.totalorder %s275, 127
      %s277 = scalar_select %p276, %s275, 127
      %s278 = smul.addr %s277, 8
      %s279 = scalar_lea.vmem %s5, %s278
      %s280 = smul.u32 32, %s16
      %p281 = scmp.lt.s32.totalorder %s280, 127
      %s282 = scalar_select %p281, %s280, 127
      %s283 = smul.addr %s282, 8
      %s284 = scalar_lea.vmem %s0, %s283
      %s285 = smul.u32 32, %s16
      %s286 = smul.u32 32, %s16
      %p287 = scmp.lt.s32.totalorder %s286, 127
      %s288 = scalar_select %p287, %s286, 127
      %s289 = smul.addr %s288, 8
      %s290 = scalar_lea.vmem %s1, %s289
      %s291 = smul.u32 32, %s16
      %s292 = smul.u32 32, %s16
      %p293 = scmp.lt.s32.totalorder %s292, 127
      %s294 = scalar_select %p293, %s292, 127
      %s295 = smul.addr %s294, 8
      %s296 = scalar_lea.vmem %s2, %s295
      %s297 = smul.u32 32, %s16
      %s298 = smul.u32 32, %s16
      %p299 = scmp.lt.s32.totalorder %s298, 127
      %s300 = scalar_select %p299, %s298, 127
      %s301 = smul.addr %s300, 8
      %s302 = scalar_lea.vmem %s3, %s301
      %s303 = smul.u32 32, %s16
      %s304 = smul.u32 32, %s16
      %p305 = scmp.lt.s32.totalorder %s304, 127
      %s306 = scalar_select %p305, %s304, 127
      %s307 = smul.addr %s306, 8
      %s308 = scalar_lea.vmem %s4, %s307
      %s309 = smul.u32 32, %s16
      %s310 = smul.u32 32, %s16
      %p311 = scmp.lt.s32.totalorder %s310, 127
      %s312 = scalar_select %p311, %s310, 127
      %s313 = smul.addr %s312, 8
      %s314 = scalar_lea.vmem %s5, %s313
      %s315 = smul.u32 32, %s16
      %v316 = vld [vmem:[%s284] sm:$0xff]
      %v317 = vld [vmem:[%s284 + $0x8] sm:$0xff]
      %v318 = vld [vmem:[%s284 + $0x10] sm:$0xff]
      %v319 = vld [vmem:[%s284 + $0x18] sm:$0xff]
      %v320 = vld [vmem:[%s284 + $0x20] sm:$0xff]
      %v321 = vld [vmem:[%s284 + $0x28] sm:$0xff]
      %v322 = vld [vmem:[%s284 + $0x30] sm:$0xff]
      %v323 = vld [vmem:[%s284 + $0x38] sm:$0xff]
      %v324 = vld [vmem:[%s284 + $0x40] sm:$0xff]
      %v325 = vld [vmem:[%s284 + $0x48] sm:$0xff]
      %v326 = vld [vmem:[%s284 + $0x50] sm:$0xff]
      %v327 = vld [vmem:[%s284 + $0x58] sm:$0xff]
      %v328 = vld [vmem:[%s284 + $0x60] sm:$0xff]
      %v329 = vld [vmem:[%s284 + $0x68] sm:$0xff]
      %v330 = vld [vmem:[%s284 + $0x70] sm:$0xff]
      %v331 = vld [vmem:[%s284 + $0x78] sm:$0xff]
      %v332 = vld [vmem:[%s284 + $0x80] sm:$0xff]
      %v333 = vld [vmem:[%s284 + $0x88] sm:$0xff]
      %v334 = vld [vmem:[%s284 + $0x90] sm:$0xff]
      %v335 = vld [vmem:[%s284 + $0x98] sm:$0xff]
      %v336 = vld [vmem:[%s284 + $0xa0] sm:$0xff]
      %v337 = vld [vmem:[%s284 + $0xa8] sm:$0xff]
      %v338 = vld [vmem:[%s284 + $0xb0] sm:$0xff]
      %v339 = vld [vmem:[%s284 + $0xb8] sm:$0xff]
      %v340 = vld [vmem:[%s284 + $0xc0] sm:$0xff]
      %v341 = vld [vmem:[%s284 + $0xc8] sm:$0xff]
      %v342 = vld [vmem:[%s284 + $0xd0] sm:$0xff]
      %v343 = vld [vmem:[%s284 + $0xd8] sm:$0xff]
      %v344 = vld [vmem:[%s284 + $0xe0] sm:$0xff]
      %v345 = vld [vmem:[%s284 + $0xe8] sm:$0xff]
      %v346 = vld [vmem:[%s284 + $0xf0] sm:$0xff]
      %v347 = vld [vmem:[%s284 + $0xf8] sm:$0xff]
      %v348 = vld [vmem:[%s290] sm:$0xff]
      %v349 = vld [vmem:[%s290 + $0x8] sm:$0xff]
      %v350 = vld [vmem:[%s290 + $0x10] sm:$0xff]
      %v351 = vld [vmem:[%s290 + $0x18] sm:$0xff]
      %v352 = vld [vmem:[%s290 + $0x20] sm:$0xff]
      %v353 = vld [vmem:[%s290 + $0x28] sm:$0xff]
      %v354 = vld [vmem:[%s290 + $0x30] sm:$0xff]
      %v355 = vld [vmem:[%s290 + $0x38] sm:$0xff]
      %v356 = vld [vmem:[%s290 + $0x40] sm:$0xff]
      %v357 = vld [vmem:[%s290 + $0x48] sm:$0xff]
      %v358 = vld [vmem:[%s290 + $0x50] sm:$0xff]
      %v359 = vld [vmem:[%s290 + $0x58] sm:$0xff]
      %v360 = vld [vmem:[%s290 + $0x60] sm:$0xff]
      %v361 = vld [vmem:[%s290 + $0x68] sm:$0xff]
      %v362 = vld [vmem:[%s290 + $0x70] sm:$0xff]
      %v363 = vld [vmem:[%s290 + $0x78] sm:$0xff]
      %v364 = vld [vmem:[%s290 + $0x80] sm:$0xff]
      %v365 = vld [vmem:[%s290 + $0x88] sm:$0xff]
      %v366 = vld [vmem:[%s290 + $0x90] sm:$0xff]
      %v367 = vld [vmem:[%s290 + $0x98] sm:$0xff]
      %v368 = vld [vmem:[%s290 + $0xa0] sm:$0xff]
      %v369 = vld [vmem:[%s290 + $0xa8] sm:$0xff]
      %v370 = vld [vmem:[%s290 + $0xb0] sm:$0xff]
      %v371 = vld [vmem:[%s290 + $0xb8] sm:$0xff]
      %v372 = vld [vmem:[%s290 + $0xc0] sm:$0xff]
      %v373 = vld [vmem:[%s290 + $0xc8] sm:$0xff]
      %v374 = vld [vmem:[%s290 + $0xd0] sm:$0xff]
      %v375 = vld [vmem:[%s290 + $0xd8] sm:$0xff]
      %v376 = vld [vmem:[%s290 + $0xe0] sm:$0xff]
      %v377 = vld [vmem:[%s290 + $0xe8] sm:$0xff]
      %v378 = vld [vmem:[%s290 + $0xf0] sm:$0xff]
      %v379 = vld [vmem:[%s290 + $0xf8] sm:$0xff]
      %v380 = vld [vmem:[%s296] sm:$0xff]
      %v381 = vld [vmem:[%s296 + $0x8] sm:$0xff]
      %v382 = vld [vmem:[%s296 + $0x10] sm:$0xff]
      %v383 = vld [vmem:[%s296 + $0x18] sm:$0xff]
      %v384 = vld [vmem:[%s296 + $0x20] sm:$0xff]
      %v385 = vld [vmem:[%s296 + $0x28] sm:$0xff]
      %v386 = vld [vmem:[%s296 + $0x30] sm:$0xff]
      %v387 = vld [vmem:[%s296 + $0x38] sm:$0xff]
      %v388 = vld [vmem:[%s296 + $0x40] sm:$0xff]
      %v389 = vld [vmem:[%s296 + $0x48] sm:$0xff]
      %v390 = vld [vmem:[%s296 + $0x50] sm:$0xff]
      %v391 = vld [vmem:[%s296 + $0x58] sm:$0xff]
      %v392 = vld [vmem:[%s296 + $0x60] sm:$0xff]
      %v393 = vld [vmem:[%s296 + $0x68] sm:$0xff]
      %v394 = vld [vmem:[%s296 + $0x70] sm:$0xff]
      %v395 = vld [vmem:[%s296 + $0x78] sm:$0xff]
      %v396 = vld [vmem:[%s296 + $0x80] sm:$0xff]
      %v397 = vld [vmem:[%s296 + $0x88] sm:$0xff]
      %v398 = vld [vmem:[%s296 + $0x90] sm:$0xff]
      %v399 = vld [vmem:[%s296 + $0x98] sm:$0xff]
      %v400 = vld [vmem:[%s296 + $0xa0] sm:$0xff]
      %v401 = vld [vmem:[%s296 + $0xa8] sm:$0xff]
      %v402 = vld [vmem:[%s296 + $0xb0] sm:$0xff]
      %v403 = vld [vmem:[%s296 + $0xb8] sm:$0xff]
      %v404 = vld [vmem:[%s296 + $0xc0] sm:$0xff]
      %v405 = vld [vmem:[%s296 + $0xc8] sm:$0xff]
      %v406 = vld [vmem:[%s296 + $0xd0] sm:$0xff]
      %v407 = vld [vmem:[%s296 + $0xd8] sm:$0xff]
      %v408 = vld [vmem:[%s296 + $0xe0] sm:$0xff]
      %v409 = vld [vmem:[%s296 + $0xe8] sm:$0xff]
      %v410 = vld [vmem:[%s296 + $0xf0] sm:$0xff]
      %v411 = vld [vmem:[%s296 + $0xf8] sm:$0xff]
      %vm412 = vcmp.gt.f32.partialorder %v380, 20.0
      %vm413 = vcmp.gt.f32.partialorder %v381, 20.0
      %vm414 = vcmp.gt.f32.partialorder %v382, 20.0
      %vm415 = vcmp.gt.f32.partialorder %v383, 20.0
      %vm416 = vcmp.gt.f32.partialorder %v384, 20.0
      %vm417 = vcmp.gt.f32.partialorder %v385, 20.0
      %vm418 = vcmp.gt.f32.partialorder %v386, 20.0
      %vm419 = vcmp.gt.f32.partialorder %v387, 20.0
      %vm420 = vcmp.gt.f32.partialorder %v388, 20.0
      %vm421 = vcmp.gt.f32.partialorder %v389, 20.0
      %vm422 = vcmp.gt.f32.partialorder %v390, 20.0
      %vm423 = vcmp.gt.f32.partialorder %v391, 20.0
      %vm424 = vcmp.gt.f32.partialorder %v392, 20.0
      %vm425 = vcmp.gt.f32.partialorder %v393, 20.0
      %vm426 = vcmp.gt.f32.partialorder %v394, 20.0
      %vm427 = vcmp.gt.f32.partialorder %v395, 20.0
      %vm428 = vcmp.gt.f32.partialorder %v396, 20.0
      %vm429 = vcmp.gt.f32.partialorder %v397, 20.0
      %vm430 = vcmp.gt.f32.partialorder %v398, 20.0
      %vm431 = vcmp.gt.f32.partialorder %v399, 20.0
      %vm432 = vcmp.gt.f32.partialorder %v400, 20.0
      %vm433 = vcmp.gt.f32.partialorder %v401, 20.0
      %vm434 = vcmp.gt.f32.partialorder %v402, 20.0
      %vm435 = vcmp.gt.f32.partialorder %v403, 20.0
      %vm436 = vcmp.gt.f32.partialorder %v404, 20.0
      %vm437 = vcmp.gt.f32.partialorder %v405, 20.0
      %vm438 = vcmp.gt.f32.partialorder %v406, 20.0
      %vm439 = vcmp.gt.f32.partialorder %v407, 20.0
      %vm440 = vcmp.gt.f32.partialorder %v408, 20.0
      %vm441 = vcmp.gt.f32.partialorder %v409, 20.0
      %vm442 = vcmp.gt.f32.partialorder %v410, 20.0
      %vm443 = vcmp.gt.f32.partialorder %v411, 20.0
      %v444 = vmin.f32 %v380, 20.0
      %v445 = vmin.f32 %v381, 20.0
      %v446 = vmin.f32 %v382, 20.0
      %v447 = vmin.f32 %v383, 20.0
      %v448 = vmin.f32 %v384, 20.0
      %v449 = vmin.f32 %v385, 20.0
      %v450 = vmin.f32 %v386, 20.0
      %v451 = vmin.f32 %v387, 20.0
      %v452 = vmin.f32 %v388, 20.0
      %v453 = vmin.f32 %v389, 20.0
      %v454 = vmin.f32 %v390, 20.0
      %v455 = vmin.f32 %v391, 20.0
      %v456 = vmin.f32 %v392, 20.0
      %v457 = vmin.f32 %v393, 20.0
      %v458 = vmin.f32 %v394, 20.0
      %v459 = vmin.f32 %v395, 20.0
      %v460 = vmin.f32 %v396, 20.0
      %v461 = vmin.f32 %v397, 20.0
      %v462 = vmin.f32 %v398, 20.0
      %v463 = vmin.f32 %v399, 20.0
      %v464 = vmin.f32 %v400, 20.0
      %v465 = vmin.f32 %v401, 20.0
      %v466 = vmin.f32 %v402, 20.0
      %v467 = vmin.f32 %v403, 20.0
      %v468 = vmin.f32 %v404, 20.0
      %v469 = vmin.f32 %v405, 20.0
      %v470 = vmin.f32 %v406, 20.0
      %v471 = vmin.f32 %v407, 20.0
      %v472 = vmin.f32 %v408, 20.0
      %v473 = vmin.f32 %v409, 20.0
      %v474 = vmin.f32 %v410, 20.0
      %v475 = vmin.f32 %v411, 20.0
      %v476 = vmul.f32 %v444, 1.442695
      %v477 = vpow.pop %v476
      %v478 = vmul.f32 %v445, 1.442695
      %v479 = vpow.pop %v478
      %v480 = vmul.f32 %v446, 1.442695
      %v481 = vpow.pop %v480
      %v482 = vmul.f32 %v447, 1.442695
      %v483 = vpow.pop %v482
      %v484 = vmul.f32 %v448, 1.442695
      %v485 = vpow.pop %v484
      %v486 = vmul.f32 %v449, 1.442695
      %v487 = vpow.pop %v486
      %v488 = vmul.f32 %v450, 1.442695
      %v489 = vpow.pop %v488
      %v490 = vmul.f32 %v451, 1.442695
      %v491 = vpow.pop %v490
      %v492 = vmul.f32 %v452, 1.442695
      %v493 = vpow.pop %v492
      %v494 = vmul.f32 %v453, 1.442695
      %v495 = vpow.pop %v494
      %v496 = vmul.f32 %v454, 1.442695
      %v497 = vpow.pop %v496
      %v498 = vmul.f32 %v455, 1.442695
      %v499 = vpow.pop %v498
      %v500 = vmul.f32 %v456, 1.442695
      %v501 = vpow.pop %v500
      %v502 = vmul.f32 %v457, 1.442695
      %v503 = vpow.pop %v502
      %v504 = vmul.f32 %v458, 1.442695
      %v505 = vpow.pop %v504
      %v506 = vmul.f32 %v459, 1.442695
      %v507 = vpow.pop %v506
      %v508 = vmul.f32 %v460, 1.442695
      %v509 = vpow.pop %v508
      %v510 = vmul.f32 %v461, 1.442695
      %v511 = vpow.pop %v510
      %v512 = vmul.f32 %v462, 1.442695
      %v513 = vpow.pop %v512
      %v514 = vmul.f32 %v463, 1.442695
      %v515 = vpow.pop %v514
      %v516 = vmul.f32 %v464, 1.442695
      %v517 = vpow.pop %v516
      %v518 = vmul.f32 %v465, 1.442695
      %v519 = vpow.pop %v518
      %v520 = vmul.f32 %v466, 1.442695
      %v521 = vpow.pop %v520
      %v522 = vmul.f32 %v467, 1.442695
      %v523 = vpow.pop %v522
      %v524 = vmul.f32 %v468, 1.442695
      %v525 = vpow.pop %v524
      %v526 = vmul.f32 %v469, 1.442695
      %v527 = vpow.pop %v526
      %v528 = vmul.f32 %v470, 1.442695
      %v529 = vpow.pop %v528
      %v530 = vmul.f32 %v471, 1.442695
      %v531 = vpow.pop %v530
      %v532 = vmul.f32 %v472, 1.442695
      %v533 = vpow.pop %v532
      %v534 = vmul.f32 %v473, 1.442695
      %v535 = vpow.pop %v534
      %v536 = vmul.f32 %v474, 1.442695
      %v537 = vpow.pop %v536
      %v538 = vmul.f32 %v475, 1.442695
      %v539 = vpow.pop %v538
      %v540 = vadd.f32 %v477, 1.0
      %v541 = vadd.f32 %v479, 1.0
      %v542 = vadd.f32 %v481, 1.0
      %v543 = vadd.f32 %v483, 1.0
      %v544 = vadd.f32 %v485, 1.0
      %v545 = vadd.f32 %v487, 1.0
      %v546 = vadd.f32 %v489, 1.0
      %v547 = vadd.f32 %v491, 1.0
      %v548 = vadd.f32 %v493, 1.0
      %v549 = vadd.f32 %v495, 1.0
      %v550 = vadd.f32 %v497, 1.0
      %v551 = vadd.f32 %v499, 1.0
      %v552 = vadd.f32 %v501, 1.0
      %v553 = vadd.f32 %v503, 1.0
      %v554 = vadd.f32 %v505, 1.0
      %v555 = vadd.f32 %v507, 1.0
      %v556 = vadd.f32 %v509, 1.0
      %v557 = vadd.f32 %v511, 1.0
      %v558 = vadd.f32 %v513, 1.0
      %v559 = vadd.f32 %v515, 1.0
      %v560 = vadd.f32 %v517, 1.0
      %v561 = vadd.f32 %v519, 1.0
      %v562 = vadd.f32 %v521, 1.0
      %v563 = vadd.f32 %v523, 1.0
      %v564 = vadd.f32 %v525, 1.0
      %v565 = vadd.f32 %v527, 1.0
      %v566 = vadd.f32 %v529, 1.0
      %v567 = vadd.f32 %v531, 1.0
      %v568 = vadd.f32 %v533, 1.0
      %v569 = vadd.f32 %v535, 1.0
      %v570 = vadd.f32 %v537, 1.0
      %v571 = vadd.f32 %v539, 1.0
      %v572 = vlog2.pop %v540
      %v573 = vmul.f32 %v572, 0.6931472
      %v574 = vlog2.pop %v541
      %v575 = vmul.f32 %v574, 0.6931472
      %v576 = vlog2.pop %v542
      %v577 = vmul.f32 %v576, 0.6931472
      %v578 = vlog2.pop %v543
      %v579 = vmul.f32 %v578, 0.6931472
      %v580 = vlog2.pop %v544
      %v581 = vmul.f32 %v580, 0.6931472
      %v582 = vlog2.pop %v545
      %v583 = vmul.f32 %v582, 0.6931472
      %v584 = vlog2.pop %v546
      %v585 = vmul.f32 %v584, 0.6931472
      %v586 = vlog2.pop %v547
      %v587 = vmul.f32 %v586, 0.6931472
      %v588 = vlog2.pop %v548
      %v589 = vmul.f32 %v588, 0.6931472
      %v590 = vlog2.pop %v549
      %v591 = vmul.f32 %v590, 0.6931472
      %v592 = vlog2.pop %v550
      %v593 = vmul.f32 %v592, 0.6931472
      %v594 = vlog2.pop %v551
      %v595 = vmul.f32 %v594, 0.6931472
      %v596 = vlog2.pop %v552
      %v597 = vmul.f32 %v596, 0.6931472
      %v598 = vlog2.pop %v553
      %v599 = vmul.f32 %v598, 0.6931472
      %v600 = vlog2.pop %v554
      %v601 = vmul.f32 %v600, 0.6931472
      %v602 = vlog2.pop %v555
      %v603 = vmul.f32 %v602, 0.6931472
      %v604 = vlog2.pop %v556
      %v605 = vmul.f32 %v604, 0.6931472
      %v606 = vlog2.pop %v557
      %v607 = vmul.f32 %v606, 0.6931472
      %v608 = vlog2.pop %v558
      %v609 = vmul.f32 %v608, 0.6931472
      %v610 = vlog2.pop %v559
      %v611 = vmul.f32 %v610, 0.6931472
      %v612 = vlog2.pop %v560
      %v613 = vmul.f32 %v612, 0.6931472
      %v614 = vlog2.pop %v561
      %v615 = vmul.f32 %v614, 0.6931472
      %v616 = vlog2.pop %v562
      %v617 = vmul.f32 %v616, 0.6931472
      %v618 = vlog2.pop %v563
      %v619 = vmul.f32 %v618, 0.6931472
      %v620 = vlog2.pop %v564
      %v621 = vmul.f32 %v620, 0.6931472
      %v622 = vlog2.pop %v565
      %v623 = vmul.f32 %v622, 0.6931472
      %v624 = vlog2.pop %v566
      %v625 = vmul.f32 %v624, 0.6931472
      %v626 = vlog2.pop %v567
      %v627 = vmul.f32 %v626, 0.6931472
      %v628 = vlog2.pop %v568
      %v629 = vmul.f32 %v628, 0.6931472
      %v630 = vlog2.pop %v569
      %v631 = vmul.f32 %v630, 0.6931472
      %v632 = vlog2.pop %v570
      %v633 = vmul.f32 %v632, 0.6931472
      %v634 = vlog2.pop %v571
      %v635 = vmul.f32 %v634, 0.6931472
      %v636 = vsel %vm412, %v380, %v573
      %v637 = vsel %vm413, %v381, %v575
      %v638 = vsel %vm414, %v382, %v577
      %v639 = vsel %vm415, %v383, %v579
      %v640 = vsel %vm416, %v384, %v581
      %v641 = vsel %vm417, %v385, %v583
      %v642 = vsel %vm418, %v386, %v585
      %v643 = vsel %vm419, %v387, %v587
      %v644 = vsel %vm420, %v388, %v589
      %v645 = vsel %vm421, %v389, %v591
      %v646 = vsel %vm422, %v390, %v593
      %v647 = vsel %vm423, %v391, %v595
      %v648 = vsel %vm424, %v392, %v597
      %v649 = vsel %vm425, %v393, %v599
      %v650 = vsel %vm426, %v394, %v601
      %v651 = vsel %vm427, %v395, %v603
      %v652 = vsel %vm428, %v396, %v605
      %v653 = vsel %vm429, %v397, %v607
      %v654 = vsel %vm430, %v398, %v609
      %v655 = vsel %vm431, %v399, %v611
      %v656 = vsel %vm432, %v400, %v613
      %v657 = vsel %vm433, %v401, %v615
      %v658 = vsel %vm434, %v402, %v617
      %v659 = vsel %vm435, %v403, %v619
      %v660 = vsel %vm436, %v404, %v621
      %v661 = vsel %vm437, %v405, %v623
      %v662 = vsel %vm438, %v406, %v625
      %v663 = vsel %vm439, %v407, %v627
      %v664 = vsel %vm440, %v408, %v629
      %v665 = vsel %vm441, %v409, %v631
      %v666 = vsel %vm442, %v410, %v633
      %v667 = vsel %vm443, %v411, %v635
      %v668 = vld [vmem:[%s302] sm:$0xff]
      %v669 = vld [vmem:[%s302 + $0x8] sm:$0xff]
      %v670 = vld [vmem:[%s302 + $0x10] sm:$0xff]
      %v671 = vld [vmem:[%s302 + $0x18] sm:$0xff]
      %v672 = vld [vmem:[%s302 + $0x20] sm:$0xff]
      %v673 = vld [vmem:[%s302 + $0x28] sm:$0xff]
      %v674 = vld [vmem:[%s302 + $0x30] sm:$0xff]
      %v675 = vld [vmem:[%s302 + $0x38] sm:$0xff]
      %v676 = vld [vmem:[%s302 + $0x40] sm:$0xff]
      %v677 = vld [vmem:[%s302 + $0x48] sm:$0xff]
      %v678 = vld [vmem:[%s302 + $0x50] sm:$0xff]
      %v679 = vld [vmem:[%s302 + $0x58] sm:$0xff]
      %v680 = vld [vmem:[%s302 + $0x60] sm:$0xff]
      %v681 = vld [vmem:[%s302 + $0x68] sm:$0xff]
      %v682 = vld [vmem:[%s302 + $0x70] sm:$0xff]
      %v683 = vld [vmem:[%s302 + $0x78] sm:$0xff]
      %v684 = vld [vmem:[%s302 + $0x80] sm:$0xff]
      %v685 = vld [vmem:[%s302 + $0x88] sm:$0xff]
      %v686 = vld [vmem:[%s302 + $0x90] sm:$0xff]
      %v687 = vld [vmem:[%s302 + $0x98] sm:$0xff]
      %v688 = vld [vmem:[%s302 + $0xa0] sm:$0xff]
      %v689 = vld [vmem:[%s302 + $0xa8] sm:$0xff]
      %v690 = vld [vmem:[%s302 + $0xb0] sm:$0xff]
      %v691 = vld [vmem:[%s302 + $0xb8] sm:$0xff]
      %v692 = vld [vmem:[%s302 + $0xc0] sm:$0xff]
      %v693 = vld [vmem:[%s302 + $0xc8] sm:$0xff]
      %v694 = vld [vmem:[%s302 + $0xd0] sm:$0xff]
      %v695 = vld [vmem:[%s302 + $0xd8] sm:$0xff]
      %v696 = vld [vmem:[%s302 + $0xe0] sm:$0xff]
      %v697 = vld [vmem:[%s302 + $0xe8] sm:$0xff]
      %v698 = vld [vmem:[%s302 + $0xf0] sm:$0xff]
      %v699 = vld [vmem:[%s302 + $0xf8] sm:$0xff]
      %vm700 = vcmp.gt.f32.partialorder %v668, 20.0
      %vm701 = vcmp.gt.f32.partialorder %v669, 20.0
      %vm702 = vcmp.gt.f32.partialorder %v670, 20.0
      %vm703 = vcmp.gt.f32.partialorder %v671, 20.0
      %vm704 = vcmp.gt.f32.partialorder %v672, 20.0
      %vm705 = vcmp.gt.f32.partialorder %v673, 20.0
      %vm706 = vcmp.gt.f32.partialorder %v674, 20.0
      %vm707 = vcmp.gt.f32.partialorder %v675, 20.0
      %vm708 = vcmp.gt.f32.partialorder %v676, 20.0
      %vm709 = vcmp.gt.f32.partialorder %v677, 20.0
      %vm710 = vcmp.gt.f32.partialorder %v678, 20.0
      %vm711 = vcmp.gt.f32.partialorder %v679, 20.0
      %vm712 = vcmp.gt.f32.partialorder %v680, 20.0
      %vm713 = vcmp.gt.f32.partialorder %v681, 20.0
      %vm714 = vcmp.gt.f32.partialorder %v682, 20.0
      %vm715 = vcmp.gt.f32.partialorder %v683, 20.0
      %vm716 = vcmp.gt.f32.partialorder %v684, 20.0
      %vm717 = vcmp.gt.f32.partialorder %v685, 20.0
      %vm718 = vcmp.gt.f32.partialorder %v686, 20.0
      %vm719 = vcmp.gt.f32.partialorder %v687, 20.0
      %vm720 = vcmp.gt.f32.partialorder %v688, 20.0
      %vm721 = vcmp.gt.f32.partialorder %v689, 20.0
      %vm722 = vcmp.gt.f32.partialorder %v690, 20.0
      %vm723 = vcmp.gt.f32.partialorder %v691, 20.0
      %vm724 = vcmp.gt.f32.partialorder %v692, 20.0
      %vm725 = vcmp.gt.f32.partialorder %v693, 20.0
      %vm726 = vcmp.gt.f32.partialorder %v694, 20.0
      %vm727 = vcmp.gt.f32.partialorder %v695, 20.0
      %vm728 = vcmp.gt.f32.partialorder %v696, 20.0
      %vm729 = vcmp.gt.f32.partialorder %v697, 20.0
      %vm730 = vcmp.gt.f32.partialorder %v698, 20.0
      %vm731 = vcmp.gt.f32.partialorder %v699, 20.0
      %v732 = vmin.f32 %v668, 20.0
      %v733 = vmin.f32 %v669, 20.0
      %v734 = vmin.f32 %v670, 20.0
      %v735 = vmin.f32 %v671, 20.0
      %v736 = vmin.f32 %v672, 20.0
      %v737 = vmin.f32 %v673, 20.0
      %v738 = vmin.f32 %v674, 20.0
      %v739 = vmin.f32 %v675, 20.0
      %v740 = vmin.f32 %v676, 20.0
      %v741 = vmin.f32 %v677, 20.0
      %v742 = vmin.f32 %v678, 20.0
      %v743 = vmin.f32 %v679, 20.0
      %v744 = vmin.f32 %v680, 20.0
      %v745 = vmin.f32 %v681, 20.0
      %v746 = vmin.f32 %v682, 20.0
      %v747 = vmin.f32 %v683, 20.0
      %v748 = vmin.f32 %v684, 20.0
      %v749 = vmin.f32 %v685, 20.0
      %v750 = vmin.f32 %v686, 20.0
      %v751 = vmin.f32 %v687, 20.0
      %v752 = vmin.f32 %v688, 20.0
      %v753 = vmin.f32 %v689, 20.0
      %v754 = vmin.f32 %v690, 20.0
      %v755 = vmin.f32 %v691, 20.0
      %v756 = vmin.f32 %v692, 20.0
      %v757 = vmin.f32 %v693, 20.0
      %v758 = vmin.f32 %v694, 20.0
      %v759 = vmin.f32 %v695, 20.0
      %v760 = vmin.f32 %v696, 20.0
      %v761 = vmin.f32 %v697, 20.0
      %v762 = vmin.f32 %v698, 20.0
      %v763 = vmin.f32 %v699, 20.0
      %v764 = vmul.f32 %v732, 1.442695
      %v765 = vpow.pop %v764
      %v766 = vmul.f32 %v733, 1.442695
      %v767 = vpow.pop %v766
      %v768 = vmul.f32 %v734, 1.442695
      %v769 = vpow.pop %v768
      %v770 = vmul.f32 %v735, 1.442695
      %v771 = vpow.pop %v770
      %v772 = vmul.f32 %v736, 1.442695
      %v773 = vpow.pop %v772
      %v774 = vmul.f32 %v737, 1.442695
      %v775 = vpow.pop %v774
      %v776 = vmul.f32 %v738, 1.442695
      %v777 = vpow.pop %v776
      %v778 = vmul.f32 %v739, 1.442695
      %v779 = vpow.pop %v778
      %v780 = vmul.f32 %v740, 1.442695
      %v781 = vpow.pop %v780
      %v782 = vmul.f32 %v741, 1.442695
      %v783 = vpow.pop %v782
      %v784 = vmul.f32 %v742, 1.442695
      %v785 = vpow.pop %v784
      %v786 = vmul.f32 %v743, 1.442695
      %v787 = vpow.pop %v786
      %v788 = vmul.f32 %v744, 1.442695
      %v789 = vpow.pop %v788
      %v790 = vmul.f32 %v745, 1.442695
      %v791 = vpow.pop %v790
      %v792 = vmul.f32 %v746, 1.442695
      %v793 = vpow.pop %v792
      %v794 = vmul.f32 %v747, 1.442695
      %v795 = vpow.pop %v794
      %v796 = vmul.f32 %v748, 1.442695
      %v797 = vpow.pop %v796
      %v798 = vmul.f32 %v749, 1.442695
      %v799 = vpow.pop %v798
      %v800 = vmul.f32 %v750, 1.442695
      %v801 = vpow.pop %v800
      %v802 = vmul.f32 %v751, 1.442695
      %v803 = vpow.pop %v802
      %v804 = vmul.f32 %v752, 1.442695
      %v805 = vpow.pop %v804
      %v806 = vmul.f32 %v753, 1.442695
      %v807 = vpow.pop %v806
      %v808 = vmul.f32 %v754, 1.442695
      %v809 = vpow.pop %v808
      %v810 = vmul.f32 %v755, 1.442695
      %v811 = vpow.pop %v810
      %v812 = vmul.f32 %v756, 1.442695
      %v813 = vpow.pop %v812
      %v814 = vmul.f32 %v757, 1.442695
      %v815 = vpow.pop %v814
      %v816 = vmul.f32 %v758, 1.442695
      %v817 = vpow.pop %v816
      %v818 = vmul.f32 %v759, 1.442695
      %v819 = vpow.pop %v818
      %v820 = vmul.f32 %v760, 1.442695
      %v821 = vpow.pop %v820
      %v822 = vmul.f32 %v761, 1.442695
      %v823 = vpow.pop %v822
      %v824 = vmul.f32 %v762, 1.442695
      %v825 = vpow.pop %v824
      %v826 = vmul.f32 %v763, 1.442695
      %v827 = vpow.pop %v826
      %v828 = vadd.f32 %v765, 1.0
      %v829 = vadd.f32 %v767, 1.0
      %v830 = vadd.f32 %v769, 1.0
      %v831 = vadd.f32 %v771, 1.0
      %v832 = vadd.f32 %v773, 1.0
      %v833 = vadd.f32 %v775, 1.0
      %v834 = vadd.f32 %v777, 1.0
      %v835 = vadd.f32 %v779, 1.0
      %v836 = vadd.f32 %v781, 1.0
      %v837 = vadd.f32 %v783, 1.0
      %v838 = vadd.f32 %v785, 1.0
      %v839 = vadd.f32 %v787, 1.0
      %v840 = vadd.f32 %v789, 1.0
      %v841 = vadd.f32 %v791, 1.0
      %v842 = vadd.f32 %v793, 1.0
      %v843 = vadd.f32 %v795, 1.0
      %v844 = vadd.f32 %v797, 1.0
      %v845 = vadd.f32 %v799, 1.0
      %v846 = vadd.f32 %v801, 1.0
      %v847 = vadd.f32 %v803, 1.0
      %v848 = vadd.f32 %v805, 1.0
      %v849 = vadd.f32 %v807, 1.0
      %v850 = vadd.f32 %v809, 1.0
      %v851 = vadd.f32 %v811, 1.0
      %v852 = vadd.f32 %v813, 1.0
      %v853 = vadd.f32 %v815, 1.0
      %v854 = vadd.f32 %v817, 1.0
      %v855 = vadd.f32 %v819, 1.0
      %v856 = vadd.f32 %v821, 1.0
      %v857 = vadd.f32 %v823, 1.0
      %v858 = vadd.f32 %v825, 1.0
      %v859 = vadd.f32 %v827, 1.0
      %v860 = vlog2.pop %v828
      %v861 = vmul.f32 %v860, 0.6931472
      %v862 = vlog2.pop %v829
      %v863 = vmul.f32 %v862, 0.6931472
      %v864 = vlog2.pop %v830
      %v865 = vmul.f32 %v864, 0.6931472
      %v866 = vlog2.pop %v831
      %v867 = vmul.f32 %v866, 0.6931472
      %v868 = vlog2.pop %v832
      %v869 = vmul.f32 %v868, 0.6931472
      %v870 = vlog2.pop %v833
      %v871 = vmul.f32 %v870, 0.6931472
      %v872 = vlog2.pop %v834
      %v873 = vmul.f32 %v872, 0.6931472
      %v874 = vlog2.pop %v835
      %v875 = vmul.f32 %v874, 0.6931472
      %v876 = vlog2.pop %v836
      %v877 = vmul.f32 %v876, 0.6931472
      %v878 = vlog2.pop %v837
      %v879 = vmul.f32 %v878, 0.6931472
      %v880 = vlog2.pop %v838
      %v881 = vmul.f32 %v880, 0.6931472
      %v882 = vlog2.pop %v839
      %v883 = vmul.f32 %v882, 0.6931472
      %v884 = vlog2.pop %v840
      %v885 = vmul.f32 %v884, 0.6931472
      %v886 = vlog2.pop %v841
      %v887 = vmul.f32 %v886, 0.6931472
      %v888 = vlog2.pop %v842
      %v889 = vmul.f32 %v888, 0.6931472
      %v890 = vlog2.pop %v843
      %v891 = vmul.f32 %v890, 0.6931472
      %v892 = vlog2.pop %v844
      %v893 = vmul.f32 %v892, 0.6931472
      %v894 = vlog2.pop %v845
      %v895 = vmul.f32 %v894, 0.6931472
      %v896 = vlog2.pop %v846
      %v897 = vmul.f32 %v896, 0.6931472
      %v898 = vlog2.pop %v847
      %v899 = vmul.f32 %v898, 0.6931472
      %v900 = vlog2.pop %v848
      %v901 = vmul.f32 %v900, 0.6931472
      %v902 = vlog2.pop %v849
      %v903 = vmul.f32 %v902, 0.6931472
      %v904 = vlog2.pop %v850
      %v905 = vmul.f32 %v904, 0.6931472
      %v906 = vlog2.pop %v851
      %v907 = vmul.f32 %v906, 0.6931472
      %v908 = vlog2.pop %v852
      %v909 = vmul.f32 %v908, 0.6931472
      %v910 = vlog2.pop %v853
      %v911 = vmul.f32 %v910, 0.6931472
      %v912 = vlog2.pop %v854
      %v913 = vmul.f32 %v912, 0.6931472
      %v914 = vlog2.pop %v855
      %v915 = vmul.f32 %v914, 0.6931472
      %v916 = vlog2.pop %v856
      %v917 = vmul.f32 %v916, 0.6931472
      %v918 = vlog2.pop %v857
      %v919 = vmul.f32 %v918, 0.6931472
      %v920 = vlog2.pop %v858
      %v921 = vmul.f32 %v920, 0.6931472
      %v922 = vlog2.pop %v859
      %v923 = vmul.f32 %v922, 0.6931472
      %v924 = vsel %vm700, %v668, %v861
      %v925 = vsel %vm701, %v669, %v863
      %v926 = vsel %vm702, %v670, %v865
      %v927 = vsel %vm703, %v671, %v867
      %v928 = vsel %vm704, %v672, %v869
      %v929 = vsel %vm705, %v673, %v871
      %v930 = vsel %vm706, %v674, %v873
      %v931 = vsel %vm707, %v675, %v875
      %v932 = vsel %vm708, %v676, %v877
      %v933 = vsel %vm709, %v677, %v879
      %v934 = vsel %vm710, %v678, %v881
      %v935 = vsel %vm711, %v679, %v883
      %v936 = vsel %vm712, %v680, %v885
      %v937 = vsel %vm713, %v681, %v887
      %v938 = vsel %vm714, %v682, %v889
      %v939 = vsel %vm715, %v683, %v891
      %v940 = vsel %vm716, %v684, %v893
      %v941 = vsel %vm717, %v685, %v895
      %v942 = vsel %vm718, %v686, %v897
      %v943 = vsel %vm719, %v687, %v899
      %v944 = vsel %vm720, %v688, %v901
      %v945 = vsel %vm721, %v689, %v903
      %v946 = vsel %vm722, %v690, %v905
      %v947 = vsel %vm723, %v691, %v907
      %v948 = vsel %vm724, %v692, %v909
      %v949 = vsel %vm725, %v693, %v911
      %v950 = vsel %vm726, %v694, %v913
      %v951 = vsel %vm727, %v695, %v915
      %v952 = vsel %vm728, %v696, %v917
      %v953 = vsel %vm729, %v697, %v919
      %v954 = vsel %vm730, %v698, %v921
      %v955 = vsel %vm731, %v699, %v923
      %957 = vset.pattern.permute.xlu0 0
      %958 = vperm.xlu0 %957, %v316
      %v959 = vpop.permute.xlu0 %958
      %962 = vset.pattern.permute.xlu0 0
      %963 = vperm.xlu0 %962, %v317
      %v964 = vpop.permute.xlu0 %963
      %967 = vset.pattern.permute.xlu0 0
      %968 = vperm.xlu0 %967, %v318
      %v969 = vpop.permute.xlu0 %968
      %972 = vset.pattern.permute.xlu0 0
      %973 = vperm.xlu0 %972, %v319
      %v974 = vpop.permute.xlu0 %973
      %977 = vset.pattern.permute.xlu0 0
      %978 = vperm.xlu0 %977, %v320
      %v979 = vpop.permute.xlu0 %978
      %982 = vset.pattern.permute.xlu0 0
      %983 = vperm.xlu0 %982, %v321
      %v984 = vpop.permute.xlu0 %983
      %987 = vset.pattern.permute.xlu0 0
      %988 = vperm.xlu0 %987, %v322
      %v989 = vpop.permute.xlu0 %988
      %992 = vset.pattern.permute.xlu0 0
      %993 = vperm.xlu0 %992, %v323
      %v994 = vpop.permute.xlu0 %993
      %997 = vset.pattern.permute.xlu0 0
      %998 = vperm.xlu0 %997, %v324
      %v999 = vpop.permute.xlu0 %998
      %1002 = vset.pattern.permute.xlu0 0
      %1003 = vperm.xlu0 %1002, %v325
      %v1004 = vpop.permute.xlu0 %1003
      %1007 = vset.pattern.permute.xlu0 0
      %1008 = vperm.xlu0 %1007, %v326
      %v1009 = vpop.permute.xlu0 %1008
      %1012 = vset.pattern.permute.xlu0 0
      %1013 = vperm.xlu0 %1012, %v327
      %v1014 = vpop.permute.xlu0 %1013
      %1017 = vset.pattern.permute.xlu0 0
      %1018 = vperm.xlu0 %1017, %v328
      %v1019 = vpop.permute.xlu0 %1018
      %1022 = vset.pattern.permute.xlu0 0
      %1023 = vperm.xlu0 %1022, %v329
      %v1024 = vpop.permute.xlu0 %1023
      %1027 = vset.pattern.permute.xlu0 0
      %1028 = vperm.xlu0 %1027, %v330
      %v1029 = vpop.permute.xlu0 %1028
      %1032 = vset.pattern.permute.xlu0 0
      %1033 = vperm.xlu0 %1032, %v331
      %v1034 = vpop.permute.xlu0 %1033
      %1037 = vset.pattern.permute.xlu0 0
      %1038 = vperm.xlu0 %1037, %v332
      %v1039 = vpop.permute.xlu0 %1038
      %1042 = vset.pattern.permute.xlu0 0
      %1043 = vperm.xlu0 %1042, %v333
      %v1044 = vpop.permute.xlu0 %1043
      %1047 = vset.pattern.permute.xlu0 0
      %1048 = vperm.xlu0 %1047, %v334
      %v1049 = vpop.permute.xlu0 %1048
      %1052 = vset.pattern.permute.xlu0 0
      %1053 = vperm.xlu0 %1052, %v335
      %v1054 = vpop.permute.xlu0 %1053
      %1057 = vset.pattern.permute.xlu0 0
      %1058 = vperm.xlu0 %1057, %v336
      %v1059 = vpop.permute.xlu0 %1058
      %1062 = vset.pattern.permute.xlu0 0
      %1063 = vperm.xlu0 %1062, %v337
      %v1064 = vpop.permute.xlu0 %1063
      %1067 = vset.pattern.permute.xlu0 0
      %1068 = vperm.xlu0 %1067, %v338
      %v1069 = vpop.permute.xlu0 %1068
      %1072 = vset.pattern.permute.xlu0 0
      %1073 = vperm.xlu0 %1072, %v339
      %v1074 = vpop.permute.xlu0 %1073
      %1077 = vset.pattern.permute.xlu0 0
      %1078 = vperm.xlu0 %1077, %v340
      %v1079 = vpop.permute.xlu0 %1078
      %1082 = vset.pattern.permute.xlu0 0
      %1083 = vperm.xlu0 %1082, %v341
      %v1084 = vpop.permute.xlu0 %1083
      %1087 = vset.pattern.permute.xlu0 0
      %1088 = vperm.xlu0 %1087, %v342
      %v1089 = vpop.permute.xlu0 %1088
      %1092 = vset.pattern.permute.xlu0 0
      %1093 = vperm.xlu0 %1092, %v343
      %v1094 = vpop.permute.xlu0 %1093
      %1097 = vset.pattern.permute.xlu0 0
      %1098 = vperm.xlu0 %1097, %v344
      %v1099 = vpop.permute.xlu0 %1098
      %1102 = vset.pattern.permute.xlu0 0
      %1103 = vperm.xlu0 %1102, %v345
      %v1104 = vpop.permute.xlu0 %1103
      %1107 = vset.pattern.permute.xlu0 0
      %1108 = vperm.xlu0 %1107, %v346
      %v1109 = vpop.permute.xlu0 %1108
      %1112 = vset.pattern.permute.xlu0 0
      %1113 = vperm.xlu0 %1112, %v347
      %v1114 = vpop.permute.xlu0 %1113
      %vm1116 = vcmp.lt.f32.partialorder %v348, %v959
      %vm1117 = vcmp.lt.f32.partialorder %v349, %v964
      %vm1118 = vcmp.lt.f32.partialorder %v350, %v969
      %vm1119 = vcmp.lt.f32.partialorder %v351, %v974
      %vm1120 = vcmp.lt.f32.partialorder %v352, %v979
      %vm1121 = vcmp.lt.f32.partialorder %v353, %v984
      %vm1122 = vcmp.lt.f32.partialorder %v354, %v989
      %vm1123 = vcmp.lt.f32.partialorder %v355, %v994
      %vm1124 = vcmp.lt.f32.partialorder %v356, %v999
      %vm1125 = vcmp.lt.f32.partialorder %v357, %v1004
      %vm1126 = vcmp.lt.f32.partialorder %v358, %v1009
      %vm1127 = vcmp.lt.f32.partialorder %v359, %v1014
      %vm1128 = vcmp.lt.f32.partialorder %v360, %v1019
      %vm1129 = vcmp.lt.f32.partialorder %v361, %v1024
      %vm1130 = vcmp.lt.f32.partialorder %v362, %v1029
      %vm1131 = vcmp.lt.f32.partialorder %v363, %v1034
      %vm1132 = vcmp.lt.f32.partialorder %v364, %v1039
      %vm1133 = vcmp.lt.f32.partialorder %v365, %v1044
      %vm1134 = vcmp.lt.f32.partialorder %v366, %v1049
      %vm1135 = vcmp.lt.f32.partialorder %v367, %v1054
      %vm1136 = vcmp.lt.f32.partialorder %v368, %v1059
      %vm1137 = vcmp.lt.f32.partialorder %v369, %v1064
      %vm1138 = vcmp.lt.f32.partialorder %v370, %v1069
      %vm1139 = vcmp.lt.f32.partialorder %v371, %v1074
      %vm1140 = vcmp.lt.f32.partialorder %v372, %v1079
      %vm1141 = vcmp.lt.f32.partialorder %v373, %v1084
      %vm1142 = vcmp.lt.f32.partialorder %v374, %v1089
      %vm1143 = vcmp.lt.f32.partialorder %v375, %v1094
      %vm1144 = vcmp.lt.f32.partialorder %v376, %v1099
      %vm1145 = vcmp.lt.f32.partialorder %v377, %v1104
      %vm1146 = vcmp.lt.f32.partialorder %v378, %v1109
      %vm1147 = vcmp.lt.f32.partialorder %v379, %v1114
      %v1148 = vsub.f32 %v959, %v348
      %v1149 = vsub.f32 %v964, %v349
      %v1150 = vsub.f32 %v969, %v350
      %v1151 = vsub.f32 %v974, %v351
      %v1152 = vsub.f32 %v979, %v352
      %v1153 = vsub.f32 %v984, %v353
      %v1154 = vsub.f32 %v989, %v354
      %v1155 = vsub.f32 %v994, %v355
      %v1156 = vsub.f32 %v999, %v356
      %v1157 = vsub.f32 %v1004, %v357
      %v1158 = vsub.f32 %v1009, %v358
      %v1159 = vsub.f32 %v1014, %v359
      %v1160 = vsub.f32 %v1019, %v360
      %v1161 = vsub.f32 %v1024, %v361
      %v1162 = vsub.f32 %v1029, %v362
      %v1163 = vsub.f32 %v1034, %v363
      %v1164 = vsub.f32 %v1039, %v364
      %v1165 = vsub.f32 %v1044, %v365
      %v1166 = vsub.f32 %v1049, %v366
      %v1167 = vsub.f32 %v1054, %v367
      %v1168 = vsub.f32 %v1059, %v368
      %v1169 = vsub.f32 %v1064, %v369
      %v1170 = vsub.f32 %v1069, %v370
      %v1171 = vsub.f32 %v1074, %v371
      %v1172 = vsub.f32 %v1079, %v372
      %v1173 = vsub.f32 %v1084, %v373
      %v1174 = vsub.f32 %v1089, %v374
      %v1175 = vsub.f32 %v1094, %v375
      %v1176 = vsub.f32 %v1099, %v376
      %v1177 = vsub.f32 %v1104, %v377
      %v1178 = vsub.f32 %v1109, %v378
      %v1179 = vsub.f32 %v1114, %v379
      %v1180 = vmax.f32 %v1148, 0.0
      %v1181 = vmax.f32 %v1149, 0.0
      %v1182 = vmax.f32 %v1150, 0.0
      %v1183 = vmax.f32 %v1151, 0.0
      %v1184 = vmax.f32 %v1152, 0.0
      %v1185 = vmax.f32 %v1153, 0.0
      %v1186 = vmax.f32 %v1154, 0.0
      %v1187 = vmax.f32 %v1155, 0.0
      %v1188 = vmax.f32 %v1156, 0.0
      %v1189 = vmax.f32 %v1157, 0.0
      %v1190 = vmax.f32 %v1158, 0.0
      %v1191 = vmax.f32 %v1159, 0.0
      %v1192 = vmax.f32 %v1160, 0.0
      %v1193 = vmax.f32 %v1161, 0.0
      %v1194 = vmax.f32 %v1162, 0.0
      %v1195 = vmax.f32 %v1163, 0.0
      %v1196 = vmax.f32 %v1164, 0.0
      %v1197 = vmax.f32 %v1165, 0.0
      %v1198 = vmax.f32 %v1166, 0.0
      %v1199 = vmax.f32 %v1167, 0.0
      %v1200 = vmax.f32 %v1168, 0.0
      %v1201 = vmax.f32 %v1169, 0.0
      %v1202 = vmax.f32 %v1170, 0.0
      %v1203 = vmax.f32 %v1171, 0.0
      %v1204 = vmax.f32 %v1172, 0.0
      %v1205 = vmax.f32 %v1173, 0.0
      %v1206 = vmax.f32 %v1174, 0.0
      %v1207 = vmax.f32 %v1175, 0.0
      %v1208 = vmax.f32 %v1176, 0.0
      %v1209 = vmax.f32 %v1177, 0.0
      %v1210 = vmax.f32 %v1178, 0.0
      %v1211 = vmax.f32 %v1179, 0.0
      %v1212 = vsub.f32 0.0, %v924
      %v1213 = vsub.f32 0.0, %v925
      %v1214 = vsub.f32 0.0, %v926
      %v1215 = vsub.f32 0.0, %v927
      %v1216 = vsub.f32 0.0, %v928
      %v1217 = vsub.f32 0.0, %v929
      %v1218 = vsub.f32 0.0, %v930
      %v1219 = vsub.f32 0.0, %v931
      %v1220 = vsub.f32 0.0, %v932
      %v1221 = vsub.f32 0.0, %v933
      %v1222 = vsub.f32 0.0, %v934
      %v1223 = vsub.f32 0.0, %v935
      %v1224 = vsub.f32 0.0, %v936
      %v1225 = vsub.f32 0.0, %v937
      %v1226 = vsub.f32 0.0, %v938
      %v1227 = vsub.f32 0.0, %v939
      %v1228 = vsub.f32 0.0, %v940
      %v1229 = vsub.f32 0.0, %v941
      %v1230 = vsub.f32 0.0, %v942
      %v1231 = vsub.f32 0.0, %v943
      %v1232 = vsub.f32 0.0, %v944
      %v1233 = vsub.f32 0.0, %v945
      %v1234 = vsub.f32 0.0, %v946
      %v1235 = vsub.f32 0.0, %v947
      %v1236 = vsub.f32 0.0, %v948
      %v1237 = vsub.f32 0.0, %v949
      %v1238 = vsub.f32 0.0, %v950
      %v1239 = vsub.f32 0.0, %v951
      %v1240 = vsub.f32 0.0, %v952
      %v1241 = vsub.f32 0.0, %v953
      %v1242 = vsub.f32 0.0, %v954
      %v1243 = vsub.f32 0.0, %v955
      %v1244 = vmul.f32 %v1212, %v1180
      %v1245 = vmul.f32 %v1213, %v1181
      %v1246 = vmul.f32 %v1214, %v1182
      %v1247 = vmul.f32 %v1215, %v1183
      %v1248 = vmul.f32 %v1216, %v1184
      %v1249 = vmul.f32 %v1217, %v1185
      %v1250 = vmul.f32 %v1218, %v1186
      %v1251 = vmul.f32 %v1219, %v1187
      %v1252 = vmul.f32 %v1220, %v1188
      %v1253 = vmul.f32 %v1221, %v1189
      %v1254 = vmul.f32 %v1222, %v1190
      %v1255 = vmul.f32 %v1223, %v1191
      %v1256 = vmul.f32 %v1224, %v1192
      %v1257 = vmul.f32 %v1225, %v1193
      %v1258 = vmul.f32 %v1226, %v1194
      %v1259 = vmul.f32 %v1227, %v1195
      %v1260 = vmul.f32 %v1228, %v1196
      %v1261 = vmul.f32 %v1229, %v1197
      %v1262 = vmul.f32 %v1230, %v1198
      %v1263 = vmul.f32 %v1231, %v1199
      %v1264 = vmul.f32 %v1232, %v1200
      %v1265 = vmul.f32 %v1233, %v1201
      %v1266 = vmul.f32 %v1234, %v1202
      %v1267 = vmul.f32 %v1235, %v1203
      %v1268 = vmul.f32 %v1236, %v1204
      %v1269 = vmul.f32 %v1237, %v1205
      %v1270 = vmul.f32 %v1238, %v1206
      %v1271 = vmul.f32 %v1239, %v1207
      %v1272 = vmul.f32 %v1240, %v1208
      %v1273 = vmul.f32 %v1241, %v1209
      %v1274 = vmul.f32 %v1242, %v1210
      %v1275 = vmul.f32 %v1243, %v1211
      %v1276 = vmul.f32 %v1244, 1.442695
      %v1277 = vpow.pop %v1276
      %v1278 = vmul.f32 %v1245, 1.442695
      %v1279 = vpow.pop %v1278
      %v1280 = vmul.f32 %v1246, 1.442695
      %v1281 = vpow.pop %v1280
      %v1282 = vmul.f32 %v1247, 1.442695
      %v1283 = vpow.pop %v1282
      %v1284 = vmul.f32 %v1248, 1.442695
      %v1285 = vpow.pop %v1284
      %v1286 = vmul.f32 %v1249, 1.442695
      %v1287 = vpow.pop %v1286
      %v1288 = vmul.f32 %v1250, 1.442695
      %v1289 = vpow.pop %v1288
      %v1290 = vmul.f32 %v1251, 1.442695
      %v1291 = vpow.pop %v1290
      %v1292 = vmul.f32 %v1252, 1.442695
      %v1293 = vpow.pop %v1292
      %v1294 = vmul.f32 %v1253, 1.442695
      %v1295 = vpow.pop %v1294
      %v1296 = vmul.f32 %v1254, 1.442695
      %v1297 = vpow.pop %v1296
      %v1298 = vmul.f32 %v1255, 1.442695
      %v1299 = vpow.pop %v1298
      %v1300 = vmul.f32 %v1256, 1.442695
      %v1301 = vpow.pop %v1300
      %v1302 = vmul.f32 %v1257, 1.442695
      %v1303 = vpow.pop %v1302
      %v1304 = vmul.f32 %v1258, 1.442695
      %v1305 = vpow.pop %v1304
      %v1306 = vmul.f32 %v1259, 1.442695
      %v1307 = vpow.pop %v1306
      %v1308 = vmul.f32 %v1260, 1.442695
      %v1309 = vpow.pop %v1308
      %v1310 = vmul.f32 %v1261, 1.442695
      %v1311 = vpow.pop %v1310
      %v1312 = vmul.f32 %v1262, 1.442695
      %v1313 = vpow.pop %v1312
      %v1314 = vmul.f32 %v1263, 1.442695
      %v1315 = vpow.pop %v1314
      %v1316 = vmul.f32 %v1264, 1.442695
      %v1317 = vpow.pop %v1316
      %v1318 = vmul.f32 %v1265, 1.442695
      %v1319 = vpow.pop %v1318
      %v1320 = vmul.f32 %v1266, 1.442695
      %v1321 = vpow.pop %v1320
      %v1322 = vmul.f32 %v1267, 1.442695
      %v1323 = vpow.pop %v1322
      %v1324 = vmul.f32 %v1268, 1.442695
      %v1325 = vpow.pop %v1324
      %v1326 = vmul.f32 %v1269, 1.442695
      %v1327 = vpow.pop %v1326
      %v1328 = vmul.f32 %v1270, 1.442695
      %v1329 = vpow.pop %v1328
      %v1330 = vmul.f32 %v1271, 1.442695
      %v1331 = vpow.pop %v1330
      %v1332 = vmul.f32 %v1272, 1.442695
      %v1333 = vpow.pop %v1332
      %v1334 = vmul.f32 %v1273, 1.442695
      %v1335 = vpow.pop %v1334
      %v1336 = vmul.f32 %v1274, 1.442695
      %v1337 = vpow.pop %v1336
      %v1338 = vmul.f32 %v1275, 1.442695
      %v1339 = vpow.pop %v1338
      %v1340 = vmul.f32 %v636, %v1277
      %v1341 = vmul.f32 %v637, %v1279
      %v1342 = vmul.f32 %v638, %v1281
      %v1343 = vmul.f32 %v639, %v1283
      %v1344 = vmul.f32 %v640, %v1285
      %v1345 = vmul.f32 %v641, %v1287
      %v1346 = vmul.f32 %v642, %v1289
      %v1347 = vmul.f32 %v643, %v1291
      %v1348 = vmul.f32 %v644, %v1293
      %v1349 = vmul.f32 %v645, %v1295
      %v1350 = vmul.f32 %v646, %v1297
      %v1351 = vmul.f32 %v647, %v1299
      %v1352 = vmul.f32 %v648, %v1301
      %v1353 = vmul.f32 %v649, %v1303
      %v1354 = vmul.f32 %v650, %v1305
      %v1355 = vmul.f32 %v651, %v1307
      %v1356 = vmul.f32 %v652, %v1309
      %v1357 = vmul.f32 %v653, %v1311
      %v1358 = vmul.f32 %v654, %v1313
      %v1359 = vmul.f32 %v655, %v1315
      %v1360 = vmul.f32 %v656, %v1317
      %v1361 = vmul.f32 %v657, %v1319
      %v1362 = vmul.f32 %v658, %v1321
      %v1363 = vmul.f32 %v659, %v1323
      %v1364 = vmul.f32 %v660, %v1325
      %v1365 = vmul.f32 %v661, %v1327
      %v1366 = vmul.f32 %v662, %v1329
      %v1367 = vmul.f32 %v663, %v1331
      %v1368 = vmul.f32 %v664, %v1333
      %v1369 = vmul.f32 %v665, %v1335
      %v1370 = vmul.f32 %v666, %v1337
      %v1371 = vmul.f32 %v667, %v1339
      %v1372 = vsel %vm1116, %v1340, 0.0
      %v1373 = vsel %vm1117, %v1341, 0.0
      %v1374 = vsel %vm1118, %v1342, 0.0
      %v1375 = vsel %vm1119, %v1343, 0.0
      %v1376 = vsel %vm1120, %v1344, 0.0
      %v1377 = vsel %vm1121, %v1345, 0.0
      %v1378 = vsel %vm1122, %v1346, 0.0
      %v1379 = vsel %vm1123, %v1347, 0.0
      %v1380 = vsel %vm1124, %v1348, 0.0
      %v1381 = vsel %vm1125, %v1349, 0.0
      %v1382 = vsel %vm1126, %v1350, 0.0
      %v1383 = vsel %vm1127, %v1351, 0.0
      %v1384 = vsel %vm1128, %v1352, 0.0
      %v1385 = vsel %vm1129, %v1353, 0.0
      %v1386 = vsel %vm1130, %v1354, 0.0
      %v1387 = vsel %vm1131, %v1355, 0.0
      %v1388 = vsel %vm1132, %v1356, 0.0
      %v1389 = vsel %vm1133, %v1357, 0.0
      %v1390 = vsel %vm1134, %v1358, 0.0
      %v1391 = vsel %vm1135, %v1359, 0.0
      %v1392 = vsel %vm1136, %v1360, 0.0
      %v1393 = vsel %vm1137, %v1361, 0.0
      %v1394 = vsel %vm1138, %v1362, 0.0
      %v1395 = vsel %vm1139, %v1363, 0.0
      %v1396 = vsel %vm1140, %v1364, 0.0
      %v1397 = vsel %vm1141, %v1365, 0.0
      %v1398 = vsel %vm1142, %v1366, 0.0
      %v1399 = vsel %vm1143, %v1367, 0.0
      %v1400 = vsel %vm1144, %v1368, 0.0
      %v1401 = vsel %vm1145, %v1369, 0.0
      %v1402 = vsel %vm1146, %v1370, 0.0
      %v1403 = vsel %vm1147, %v1371, 0.0
      %1404 = vadd.xlane.f32.xlu0 %v1372
      %v1405 = vpop.xlane.xlu0 %1404
      %1406 = vadd.xlane.f32.xlu0 %v1373
      %v1407 = vpop.xlane.xlu0 %1406
      %1408 = vadd.xlane.f32.xlu0 %v1374
      %v1409 = vpop.xlane.xlu0 %1408
      %1410 = vadd.xlane.f32.xlu0 %v1375
      %v1411 = vpop.xlane.xlu0 %1410
      %1412 = vadd.xlane.f32.xlu0 %v1376
      %v1413 = vpop.xlane.xlu0 %1412
      %1414 = vadd.xlane.f32.xlu0 %v1377
      %v1415 = vpop.xlane.xlu0 %1414
      %1416 = vadd.xlane.f32.xlu0 %v1378
      %v1417 = vpop.xlane.xlu0 %1416
      %1418 = vadd.xlane.f32.xlu0 %v1379
      %v1419 = vpop.xlane.xlu0 %1418
      %1420 = vadd.xlane.f32.xlu0 %v1380
      %v1421 = vpop.xlane.xlu0 %1420
      %1422 = vadd.xlane.f32.xlu0 %v1381
      %v1423 = vpop.xlane.xlu0 %1422
      %1424 = vadd.xlane.f32.xlu0 %v1382
      %v1425 = vpop.xlane.xlu0 %1424
      %1426 = vadd.xlane.f32.xlu0 %v1383
      %v1427 = vpop.xlane.xlu0 %1426
      %1428 = vadd.xlane.f32.xlu0 %v1384
      %v1429 = vpop.xlane.xlu0 %1428
      %1430 = vadd.xlane.f32.xlu0 %v1385
      %v1431 = vpop.xlane.xlu0 %1430
      %1432 = vadd.xlane.f32.xlu0 %v1386
      %v1433 = vpop.xlane.xlu0 %1432
      %1434 = vadd.xlane.f32.xlu0 %v1387
      %v1435 = vpop.xlane.xlu0 %1434
      %1436 = vadd.xlane.f32.xlu0 %v1388
      %v1437 = vpop.xlane.xlu0 %1436
      %1438 = vadd.xlane.f32.xlu0 %v1389
      %v1439 = vpop.xlane.xlu0 %1438
      %1440 = vadd.xlane.f32.xlu0 %v1390
      %v1441 = vpop.xlane.xlu0 %1440
      %1442 = vadd.xlane.f32.xlu0 %v1391
      %v1443 = vpop.xlane.xlu0 %1442
      %1444 = vadd.xlane.f32.xlu0 %v1392
      %v1445 = vpop.xlane.xlu0 %1444
      %1446 = vadd.xlane.f32.xlu0 %v1393
      %v1447 = vpop.xlane.xlu0 %1446
      %1448 = vadd.xlane.f32.xlu0 %v1394
      %v1449 = vpop.xlane.xlu0 %1448
      %1450 = vadd.xlane.f32.xlu0 %v1395
      %v1451 = vpop.xlane.xlu0 %1450
      %1452 = vadd.xlane.f32.xlu0 %v1396
      %v1453 = vpop.xlane.xlu0 %1452
      %1454 = vadd.xlane.f32.xlu0 %v1397
      %v1455 = vpop.xlane.xlu0 %1454
      %1456 = vadd.xlane.f32.xlu0 %v1398
      %v1457 = vpop.xlane.xlu0 %1456
      %1458 = vadd.xlane.f32.xlu0 %v1399
      %v1459 = vpop.xlane.xlu0 %1458
      %1460 = vadd.xlane.f32.xlu0 %v1400
      %v1461 = vpop.xlane.xlu0 %1460
      %1462 = vadd.xlane.f32.xlu0 %v1401
      %v1463 = vpop.xlane.xlu0 %1462
      %1464 = vadd.xlane.f32.xlu0 %v1402
      %v1465 = vpop.xlane.xlu0 %1464
      %1466 = vadd.xlane.f32.xlu0 %v1403
      %v1467 = vpop.xlane.xlu0 %1466
      %v1468 = vld [vmem:[%s308] sm:$0xff]
      %v1469 = vld [vmem:[%s308 + $0x8] sm:$0xff]
      %v1470 = vld [vmem:[%s308 + $0x10] sm:$0xff]
      %v1471 = vld [vmem:[%s308 + $0x18] sm:$0xff]
      %v1472 = vld [vmem:[%s308 + $0x20] sm:$0xff]
      %v1473 = vld [vmem:[%s308 + $0x28] sm:$0xff]
      %v1474 = vld [vmem:[%s308 + $0x30] sm:$0xff]
      %v1475 = vld [vmem:[%s308 + $0x38] sm:$0xff]
      %v1476 = vld [vmem:[%s308 + $0x40] sm:$0xff]
      %v1477 = vld [vmem:[%s308 + $0x48] sm:$0xff]
      %v1478 = vld [vmem:[%s308 + $0x50] sm:$0xff]
      %v1479 = vld [vmem:[%s308 + $0x58] sm:$0xff]
      %v1480 = vld [vmem:[%s308 + $0x60] sm:$0xff]
      %v1481 = vld [vmem:[%s308 + $0x68] sm:$0xff]
      %v1482 = vld [vmem:[%s308 + $0x70] sm:$0xff]
      %v1483 = vld [vmem:[%s308 + $0x78] sm:$0xff]
      %v1484 = vld [vmem:[%s308 + $0x80] sm:$0xff]
      %v1485 = vld [vmem:[%s308 + $0x88] sm:$0xff]
      %v1486 = vld [vmem:[%s308 + $0x90] sm:$0xff]
      %v1487 = vld [vmem:[%s308 + $0x98] sm:$0xff]
      %v1488 = vld [vmem:[%s308 + $0xa0] sm:$0xff]
      %v1489 = vld [vmem:[%s308 + $0xa8] sm:$0xff]
      %v1490 = vld [vmem:[%s308 + $0xb0] sm:$0xff]
      %v1491 = vld [vmem:[%s308 + $0xb8] sm:$0xff]
      %v1492 = vld [vmem:[%s308 + $0xc0] sm:$0xff]
      %v1493 = vld [vmem:[%s308 + $0xc8] sm:$0xff]
      %v1494 = vld [vmem:[%s308 + $0xd0] sm:$0xff]
      %v1495 = vld [vmem:[%s308 + $0xd8] sm:$0xff]
      %v1496 = vld [vmem:[%s308 + $0xe0] sm:$0xff]
      %v1497 = vld [vmem:[%s308 + $0xe8] sm:$0xff]
      %v1498 = vld [vmem:[%s308 + $0xf0] sm:$0xff]
      %v1499 = vld [vmem:[%s308 + $0xf8] sm:$0xff]
      %v1500 = vadd.f32 %v1468, %v1405
      %v1501 = vadd.f32 %v1469, %v1407
      %v1502 = vadd.f32 %v1470, %v1409
      %v1503 = vadd.f32 %v1471, %v1411
      %v1504 = vadd.f32 %v1472, %v1413
      %v1505 = vadd.f32 %v1473, %v1415
      %v1506 = vadd.f32 %v1474, %v1417
      %v1507 = vadd.f32 %v1475, %v1419
      %v1508 = vadd.f32 %v1476, %v1421
      %v1509 = vadd.f32 %v1477, %v1423
      %v1510 = vadd.f32 %v1478, %v1425
      %v1511 = vadd.f32 %v1479, %v1427
      %v1512 = vadd.f32 %v1480, %v1429
      %v1513 = vadd.f32 %v1481, %v1431
      %v1514 = vadd.f32 %v1482, %v1433
      %v1515 = vadd.f32 %v1483, %v1435
      %v1516 = vadd.f32 %v1484, %v1437
      %v1517 = vadd.f32 %v1485, %v1439
      %v1518 = vadd.f32 %v1486, %v1441
      %v1519 = vadd.f32 %v1487, %v1443
      %v1520 = vadd.f32 %v1488, %v1445
      %v1521 = vadd.f32 %v1489, %v1447
      %v1522 = vadd.f32 %v1490, %v1449
      %v1523 = vadd.f32 %v1491, %v1451
      %v1524 = vadd.f32 %v1492, %v1453
      %v1525 = vadd.f32 %v1493, %v1455
      %v1526 = vadd.f32 %v1494, %v1457
      %v1527 = vadd.f32 %v1495, %v1459
      %v1528 = vadd.f32 %v1496, %v1461
      %v1529 = vadd.f32 %v1497, %v1463
      %v1530 = vadd.f32 %v1498, %v1465
      %v1531 = vadd.f32 %v1499, %v1467
      %vm1532 = vcmask 7168
      %1533 = vst.msk [vmem:[%s314] sm:$0xff] %vm1532, %v1500
      %1534 = vst.msk [vmem:[%s314 + $0x8] sm:$0xff] %vm1532, %v1501
      %1535 = vst.msk [vmem:[%s314 + $0x10] sm:$0xff] %vm1532, %v1502
      %1536 = vst.msk [vmem:[%s314 + $0x18] sm:$0xff] %vm1532, %v1503
      %1537 = vst.msk [vmem:[%s314 + $0x20] sm:$0xff] %vm1532, %v1504
      %1538 = vst.msk [vmem:[%s314 + $0x28] sm:$0xff] %vm1532, %v1505
      %1539 = vst.msk [vmem:[%s314 + $0x30] sm:$0xff] %vm1532, %v1506
      %1540 = vst.msk [vmem:[%s314 + $0x38] sm:$0xff] %vm1532, %v1507
      %1541 = vst.msk [vmem:[%s314 + $0x40] sm:$0xff] %vm1532, %v1508
      %1542 = vst.msk [vmem:[%s314 + $0x48] sm:$0xff] %vm1532, %v1509
      %1543 = vst.msk [vmem:[%s314 + $0x50] sm:$0xff] %vm1532, %v1510
      %1544 = vst.msk [vmem:[%s314 + $0x58] sm:$0xff] %vm1532, %v1511
      %1545 = vst.msk [vmem:[%s314 + $0x60] sm:$0xff] %vm1532, %v1512
      %1546 = vst.msk [vmem:[%s314 + $0x68] sm:$0xff] %vm1532, %v1513
      %1547 = vst.msk [vmem:[%s314 + $0x70] sm:$0xff] %vm1532, %v1514
      %1548 = vst.msk [vmem:[%s314 + $0x78] sm:$0xff] %vm1532, %v1515
      %1549 = vst.msk [vmem:[%s314 + $0x80] sm:$0xff] %vm1532, %v1516
      %1550 = vst.msk [vmem:[%s314 + $0x88] sm:$0xff] %vm1532, %v1517
      %1551 = vst.msk [vmem:[%s314 + $0x90] sm:$0xff] %vm1532, %v1518
      %1552 = vst.msk [vmem:[%s314 + $0x98] sm:$0xff] %vm1532, %v1519
      %1553 = vst.msk [vmem:[%s314 + $0xa0] sm:$0xff] %vm1532, %v1520
      %1554 = vst.msk [vmem:[%s314 + $0xa8] sm:$0xff] %vm1532, %v1521
      %1555 = vst.msk [vmem:[%s314 + $0xb0] sm:$0xff] %vm1532, %v1522
      %1556 = vst.msk [vmem:[%s314 + $0xb8] sm:$0xff] %vm1532, %v1523
      %1557 = vst.msk [vmem:[%s314 + $0xc0] sm:$0xff] %vm1532, %v1524
      %1558 = vst.msk [vmem:[%s314 + $0xc8] sm:$0xff] %vm1532, %v1525
      %1559 = vst.msk [vmem:[%s314 + $0xd0] sm:$0xff] %vm1532, %v1526
      %1560 = vst.msk [vmem:[%s314 + $0xd8] sm:$0xff] %vm1532, %v1527
      %1561 = vst.msk [vmem:[%s314 + $0xe0] sm:$0xff] %vm1532, %v1528
      %1562 = vst.msk [vmem:[%s314 + $0xe8] sm:$0xff] %vm1532, %v1529
      %1563 = vst.msk [vmem:[%s314 + $0xf0] sm:$0xff] %vm1532, %v1530
      %1564 = vst.msk [vmem:[%s314 + $0xf8] sm:$0xff] %vm1532, %v1531
      %s1565 = smul.u32 32, %s16
      %p1566 = scmp.lt.s32.totalorder %s1565, 127
      %s1567 = scalar_select %p1566, %s1565, 127
      %s1568 = smul.addr %s1567, 8
      %s1569 = scalar_lea.vmem %s5, %s1568
      // Predicated region
      $region41: #{_lambda_.1} parent=39 // pred_check
        %p1570 = pneg %p164
      $region42: #{_lambda_.1} parent=39 // pred_check_branch
        %1572 = sbr.rel (%p1570) target = $region44
      $region43: #{_lambda_.1} parent=39 // pred_region
        %s1573 = smul.u32 32, %s16
      $region44: #{_lambda_.1} parent=39 // pred_fallthru
        _
    $region40: #{_lambda_.1} parent=5 // pred_fallthru
      _
    %p1574 = scmp.le.s32.totalorder 2, %s11
    // Predicated region
    $region45: #{_lambda_.1} parent=5 // pred_check
      %p1575 = pneg %p1574
    $region46: #{_lambda_.1} parent=5 // pred_check_branch
      %1577 = sbr.rel (%p1575) target = $region48
    $region47: #{_lambda_.1} parent=5 // pred_region
      %s1578 = ssub.s32 %s11, 2
      // Predicated region
      $region49: #{_lambda_.1} parent=47 // pred_check
        %p1579 = pneg %p170
      $region50: #{_lambda_.1} parent=47 // pred_check_branch
        %1581 = sbr.rel (%p1579) target = $region52
      $region51: #{_lambda_.1} parent=47 // pred_region
        %s1582 = smul.u32 32, %s17
        %p1583 = scmp.lt.s32.totalorder %s1582, 127
        %s1584 = scalar_select %p1583, %s1582, 127
        %s1585 = smul.addr %s1584, 8
        %s1586 = scalar_lea.vmem %s5, %s1585
      $region52: #{_lambda_.1} parent=47 // pred_fallthru
        _
    $region48: #{_lambda_.1} parent=5 // pred_fallthru
      _
  $region6: #{_lambda_.1} parent=0 // loop_footer
    %s15 = sadd.s32 1, %s11
  $region7: #{_lambda_.1} parent=0 // loop_footer_branch
    %10 = sbr.rel target = $region3
  $region8: #{_lambda_.1} parent=0 // loop_exit
    _

</llo_original>
